<compile_context>
chip_gen: v6e
topology: v6e:2x2x1
jax: 0.10.0
libtpu: 0.0.40
codegen_flags: <defaults>
</compile_context>

<pallas_src>
import functools

import jax
import jax.numpy as jnp
from jax.experimental import pallas as pl
from jax.experimental.pallas import tpu as pltpu


def _round_up(x, m):
    return (x + m - 1) // m * m


def _cdiv(a, b):
    return (a + b - 1) // b


def _vmem_capacity_bytes():
    try:
        return int(pltpu.get_tpu_info().vmem_capacity_bytes)
    except Exception:
        return 64 << 20  # conservative default (v7x-sized VMEM)


# ---------------------------------------------------------------------------
# Fused MLP kernel.  grid = (batch_tiles, n_hidden + 1); layer step l:
#   l == 0             : h = act(x @ W_first + b_first)
#   1 <= l <= n_hidden : h = act(h @ W_hidden[l-1] + b_hidden[l-1] (+ h if residual))
#   l == n_hidden      : additionally out = h @ W_last + b_last
# (the final grid step runs the last hidden layer AND the output layer; the math is
#  exactly the PyTorch forward, the step just holds two matmuls.)
# ---------------------------------------------------------------------------
def _mlp_fused_kernel(*refs, n_hidden, residual, gelu, gelu_approx, hidden_resident):
    if n_hidden > 0:
        (x_ref, wf_ref, bf_ref, wh_ref, bh_ref, wl_ref, bl_ref, o_ref, h_ref) = refs
    else:
        (x_ref, wf_ref, bf_ref, wl_ref, bl_ref, o_ref, h_ref) = refs
        wh_ref = bh_ref = None

    l = pl.program_id(1)

    def act(v):
        if gelu:
            return jax.nn.gelu(v, approximate=gelu_approx)
        return jnp.maximum(v, 0.0)

    @pl.when(l == 0)
    def _first():
        y = jnp.dot(x_ref[...], wf_ref[...], preferred_element_type=jnp.float32)
        y = y + bf_ref[...].astype(jnp.float32)        # bias + activation in matmul epilogue
        h_ref[...] = act(y).astype(h_ref.dtype)

    if n_hidden > 0:
        @pl.when(l > 0)
        def _hidden():
            if hidden_resident:
                li = jnp.maximum(l - 1, 0)
                w = wh_ref[li]                         # dynamic index into resident stack
                b = bh_ref[li]
            else:
                w = wh_ref[...]                        # streamed layer block
                b = bh_ref[...]
            h = h_ref[...]
            y = jnp.dot(h, w, preferred_element_type=jnp.float32)
            y = y + b.astype(jnp.float32)
            if residual:
                y = y + h.astype(jnp.float32)          # residual added before activation
            h_ref[...] = act(y).astype(h_ref.dtype)

    @pl.when(l == n_hidden)
    def _last():
        y = jnp.dot(h_ref[...], wl_ref[...], preferred_element_type=jnp.float32)
        y = y + bl_ref[...].astype(jnp.float32)
        o_ref[...] = y.astype(o_ref.dtype)


# ---------------------------------------------------------------------------
# Wrapper: pad/stack params, size tiles per chip generation, call the fused kernel.
# ---------------------------------------------------------------------------
def mlp_forward(params, x, *, residual=False, gelu=False, gelu_approx=True,
                compute_dtype=jnp.bfloat16, block_batch=None, out_dtype=None,
                resident_hidden=None):
    w_first, b_first = params["first"]
    hidden = params["hidden"]
    w_last, b_last = params["last"]

    batch, in_dim = x.shape
    hid = w_first.shape[1]
    out_dim = w_last.shape[1]
    n_hidden = len(hidden)

    cdt = jnp.dtype(compute_dtype)
    odt = jnp.dtype(out_dtype) if out_dtype is not None else x.dtype
    isz = cdt.itemsize
    osz = odt.itemsize

    # Lane-dense padding: feature dims -> multiples of 128.
    Kp = _round_up(in_dim, 128)
    Hp = _round_up(hid, 128)
    Np = _round_up(out_dim, 128)

    # ---- Per-chip VMEM planning -------------------------------------------------
    vmem_cap = _vmem_capacity_bytes()
    big_vmem = vmem_cap >= (100 << 20)                  # v5e/v6e: 128 MiB; v7x: 64 MiB
    vmem_budget = int(vmem_cap * 0.85)                  # headroom for compiler scratch / sems

    def est_vmem(bm, resident):
        b = bm * Kp * isz                               # x             (single-buffered)
        b += Kp * Hp * isz + Hp * 4                     # W_first, b_first (single-buffered)
        b += Hp * Np * isz + Np * 4                     # W_last, b_last   (single-buffered)
        if n_hidden:
            if resident:
                b += n_hidden * (Hp * Hp * isz + Hp * 4)
            else:
                b += 2 * (Hp * Hp * isz + Hp * 4)       # streamed: double-buffered
        b += 2 * bm * Np * osz                          # output (double-buffered)
        b += bm * Hp * isz                              # resident activation scratch
        return b

    # Batch tile: large enough to hide weight streaming behind the MXU.
    if block_batch is None:
        block_batch = 512 if big_vmem else 384
    bm = max(16, _round_up(min(batch, block_batch), 16))   # >=16: bf16 sublane packing
    n_tiles = _cdiv(batch, bm)
    if (not big_vmem) and n_tiles == 1 and batch >= 32:
        n_tiles = 2                                      # v7x: 2 TensorCores -> >= 2 batch tiles
    bm = max(16, _round_up(_cdiv(batch, n_tiles), 16))

    # Keep the whole hidden-weight stack resident in VMEM when it fits the budget.
    if resident_hidden is None:
        hidden_resident = n_hidden > 0 and est_vmem(16, True) <= vmem_budget
    else:
        hidden_resident = bool(resident_hidden) and n_hidden > 0
    while est_vmem(bm, hidden_resident) > vmem_budget and bm > 16:
        bm = max(16, _round_up(bm // 2, 16))
    n_tiles = _cdiv(batch, bm)
    Bp = bm * n_tiles

    vmem_limit = int(min(max(est_vmem(bm, hidden_resident) + (8 << 20), 32 << 20),
                         vmem_budget))

    # ---- Pad / stack parameters ---------------------------------------------------
    def pad2(a, r, c):
        return jnp.pad(a, ((0, r - a.shape[0]), (0, c - a.shape[1])))

    xp = pad2(x, Bp, Kp).astype(cdt)
    wf = pad2(w_first, Kp, Hp).astype(cdt)
    bf = pad2(b_first, 1, Hp).astype(jnp.float32)
    wl = pad2(w_last, Hp, Np).astype(cdt)
    bl = pad2(b_last, 1, Np).astype(jnp.float32)
    if n_hidden:
        wh = jnp.stack([pad2(w, Hp, Hp) for (w, _) in hidden]).astype(cdt)
        bh = jnp.stack([pad2(b, 1, Hp) for (_, b) in hidden]).astype(jnp.float32)

    kernel = functools.partial(
        _mlp_fused_kernel,
        n_hidden=n_hidden, residual=residual, gelu=gelu, gelu_approx=gelu_approx,
        hidden_resident=hidden_resident,
    )

    def build_and_call(single_buffer_invariants):
        def inv_spec(shape, imap):
            # Blocks whose index never changes along the layer axis: the second pipeline
            # buffer is pure VMEM waste, so request a single buffer.
            if single_buffer_invariants:
                return pl.BlockSpec(shape, imap, pipeline_mode=pl.Buffered(1))
            return pl.BlockSpec(shape, imap)

        in_specs = [
            inv_spec((bm, Kp), lambda i, l: (i, 0)),         # x (per batch tile, layer-invariant)
            inv_spec((Kp, Hp), lambda i, l: (0, 0)),         # W_first
            inv_spec((1, Hp), lambda i, l: (0, 0)),          # b_first
        ]
        args = [xp, wf, bf]
        if n_hidden:
            if hidden_resident:
                in_specs += [
                    inv_spec((n_hidden, Hp, Hp), lambda i, l: (0, 0, 0)),   # resident stack
                    inv_spec((n_hidden, 1, Hp), lambda i, l: (0, 0, 0)),
                ]
            else:
                hid_idx = lambda i, l: (jnp.maximum(l - 1, 0), 0, 0)
                in_specs += [
                    pl.BlockSpec((None, Hp, Hp), hid_idx),   # streamed per layer (double-buffered)
                    pl.BlockSpec((None, 1, Hp), hid_idx),
                ]
            args += [wh, bh]
        in_specs += [
            inv_spec((Hp, Np), lambda i, l: (0, 0)),         # W_last
            inv_spec((1, Np), lambda i, l: (0, 0)),          # b_last
        ]
        args += [wl, bl]

        return pl.pallas_call(
            kernel,
            out_shape=jax.ShapeDtypeStruct((Bp, Np), odt),
            grid_spec=pltpu.PrefetchScalarGridSpec(
                num_scalar_prefetch=0,
                grid=(Bp // bm, n_hidden + 1),
                in_specs=in_specs,
                out_specs=pl.BlockSpec((bm, Np), lambda i, l: (i, 0)),
                scratch_shapes=[pltpu.VMEM((bm, Hp), cdt)],   # activation, resident in VMEM
            ),
            compiler_params=pltpu.CompilerParams(
                dimension_semantics=("parallel", "arbitrary"),
                vmem_limit_bytes=vmem_limit,
            ),
        )(*args)

    try:
        out = build_and_call(True)
    except Exception:
        # Fallback for JAX builds where per-BlockSpec pipeline_mode=pl.Buffered(1) is not
        # supported by the TPU pallas_call pipeline; everything else is identical.
        out = build_and_call(False)

    return out[:batch, :out_dim]


# ---------------------------------------------------------------------------
# Parameter init (mimics nn.Linear: uniform(-1/sqrt(fan_in), 1/sqrt(fan_in))).
# Weights stored as (in, out) = transpose of PyTorch's (out, in); bias (1, out).
# ---------------------------------------------------------------------------
def init_mlp_params(key, input_dim, output_dim, hidden_dim, n_layers):
    def linear(key, fan_in, fan_out):
        kw, kb = jax.random.split(key)
        bound = 1.0 / jnp.sqrt(fan_in)
        w = jax.random.uniform(kw, (fan_in, fan_out), jnp.float32, -bound, bound)
        b = jax.random.uniform(kb, (1, fan_out), jnp.float32, -bound, bound)
        return w, b

    keys = jax.random.split(key, n_layers + 2)
    return {
        "first": linear(keys[0], input_dim, hidden_dim),
        "hidden": [linear(keys[1 + i], hidden_dim, hidden_dim) for i in range(n_layers)],
        "last": linear(keys[n_layers + 1], hidden_dim, output_dim),
    }


# ---------------------------------------------------------------------------
# Pure-JAX reference (mirrors the PyTorch forward).
# ---------------------------------------------------------------------------
def mlp_forward_ref(params, x, *, residual=False, gelu=False, gelu_approx=True):
    act = (lambda v: jax.nn.gelu(v, approximate=gelu_approx)) if gelu else (
        lambda v: jnp.maximum(v, 0.0))
    w, b = params["first"]
    h = act(x @ w + b)
    for (w, b) in params["hidden"]:
        y = h @ w + b
        h = act(y + h) if residual else act(y)
    w, b = params["last"]
    return h @ w + b


if __name__ == "__main__":
    key = jax.random.PRNGKey(0)

    # Small config matching the module's typical use.
    batch, input_dim, hidden_dim, output_dim, n_layers = 8, 16, 32, 8, 2
    k_params, k_x = jax.random.split(key)
    params = init_mlp_params(k_params, input_dim, output_dim, hidden_dim, n_layers)
    x = jax.random.normal(k_x, (batch, input_dim), jnp.float32)

    # 1) f32 compute, ReLU, no residual — tight check.
    out = mlp_forward(params, x, residual=False, gelu=False, compute_dtype=jnp.float32)
    jax.block_until_ready(out)
    ref = mlp_forward_ref(params, x, residual=False, gelu=False)
    assert out.shape == ref.shape
    assert jnp.allclose(out, ref, atol=1e-5, rtol=1e-5), float(jnp.max(jnp.abs(out - ref)))

    # 2) bf16 weights/activations (MXU/DMA throughput), GELU + residual — looser check.
    out2 = mlp_forward(params, x, residual=True, gelu=True, compute_dtype=jnp.bfloat16)
    jax.block_until_ready(out2)
    ref2 = mlp_forward_ref(params, x, residual=True, gelu=True)
    assert jnp.allclose(out2, ref2, atol=5e-2, rtol=5e-2), float(jnp.max(jnp.abs(out2 - ref2)))

    # 3) Larger config exercising multiple batch tiles + resident hidden stack, f32.
    k2p, k2x = jax.random.split(jax.random.PRNGKey(1))
    b2, i2, h2, o2, nl2 = 400, 48, 256, 24, 3
    params2 = init_mlp_params(k2p, i2, o2, h2, nl2)
    x2 = jax.random.normal(k2x, (b2, i2), jnp.float32)
    out3 = mlp_forward(params2, x2, residual=True, gelu=True,
                       compute_dtype=jnp.float32, block_batch=128)
    jax.block_until_ready(out3)
    ref3 = mlp_forward_ref(params2, x2, residual=True, gelu=True)
    assert jnp.allclose(out3, ref3, atol=1e-4, rtol=1e-4), float(jnp.max(jnp.abs(out3 - ref3)))

    # 3b) Same config but force the streamed hidden-weight path (layer-axis DMA).
    out3b = mlp_forward(params2, x2, residual=True, gelu=True,
                        compute_dtype=jnp.float32, block_batch=128, resident_hidden=False)
    jax.block_until_ready(out3b)
    assert jnp.allclose(out3b, ref3, atol=1e-4, rtol=1e-4), float(jnp.max(jnp.abs(out3b - ref3)))

    # 4) n_hidden == 0 path (wh/bh dropped from the pallas_call entirely).
    k3p, k3x = jax.random.split(jax.random.PRNGKey(2))
    params3 = init_mlp_params(k3p, 16, 8, 32, 0)
    x3 = jax.random.normal(k3x, (8, 16), jnp.float32)
    out4 = mlp_forward(params3, x3, compute_dtype=jnp.float32)
    jax.block_until_ready(out4)
    ref4 = mlp_forward_ref(params3, x3)
    assert jnp.allclose(out4, ref4, atol=1e-5, rtol=1e-5)

    print("KERNEL_OK")
</pallas_src>

<mosaic_0001>
module attributes {stable_mosaic.version = 11 : i64} {
  func.func @_mlp_fused_kernel(%arg0: i32, %arg1: i32, %arg2: memref<16x128xf32, #tpu.memory_space<vmem>>, %arg3: memref<128x128xf32, #tpu.memory_space<vmem>>, %arg4: memref<1x128xf32, #tpu.memory_space<vmem>>, %arg5: memref<2x128x128xf32, #tpu.memory_space<vmem>>, %arg6: memref<2x1x128xf32, #tpu.memory_space<vmem>>, %arg7: memref<128x128xf32, #tpu.memory_space<vmem>>, %arg8: memref<1x128xf32, #tpu.memory_space<vmem>>, %arg9: memref<16x128xf32, #tpu.memory_space<vmem>>, %arg10: memref<16x128xf32, #tpu.memory_space<vmem>>) attributes {dimension_semantics = [#tpu.dimension_semantics<parallel>, #tpu.dimension_semantics<arbitrary>], iteration_bounds = array<i64: 1, 3>, scalar_prefetch = 0 : i64, scratch_operands = 1 : i64, tpu.core_type = #tpu.core_type<tc>, window_params = [{pipeline_mode = #tpu.pipeline_mode<synchronous>, transform_indices = @transform_0, window_bounds = array<i64: 16, 128>}, {pipeline_mode = #tpu.pipeline_mode<synchronous>, transform_indices = @transform_1, window_bounds = array<i64: 128, 128>}, {pipeline_mode = #tpu.pipeline_mode<synchronous>, transform_indices = @transform_2, window_bounds = array<i64: 1, 128>}, {pipeline_mode = #tpu.pipeline_mode<synchronous>, transform_indices = @transform_3, window_bounds = array<i64: 2, 128, 128>}, {pipeline_mode = #tpu.pipeline_mode<synchronous>, transform_indices = @transform_4, window_bounds = array<i64: 2, 1, 128>}, {pipeline_mode = #tpu.pipeline_mode<synchronous>, transform_indices = @transform_5, window_bounds = array<i64: 128, 128>}, {pipeline_mode = #tpu.pipeline_mode<synchronous>, transform_indices = @transform_6, window_bounds = array<i64: 1, 128>}, {transform_indices = @transform_7, window_bounds = array<i64: 16, 128>}]} {
    %c0_i32 = arith.constant 0 : i32
    %0 = arith.cmpi eq, %arg1, %c0_i32 : i32
    %1 = arith.extui %0 : i1 to i32
    %c0_i32_0 = arith.constant 0 : i32
    %2 = arith.cmpi ne, %1, %c0_i32_0 : i32
    scf.if %2 {
      %c0 = arith.constant 0 : index
      %c0_4 = arith.constant 0 : index
      %9 = vector.load %arg2[%c0, %c0_4] : memref<16x128xf32, #tpu.memory_space<vmem>>, vector<16x128xf32>
      %c0_5 = arith.constant 0 : index
      %c0_6 = arith.constant 0 : index
      %10 = vector.load %arg3[%c0_5, %c0_6] : memref<128x128xf32, #tpu.memory_space<vmem>>, vector<128x128xf32>
      %cst = arith.constant dense<0.000000e+00> : vector<16x128xf32>
      %11 = tpu.matmul %9, %10, %cst {dimension_numbers = #tpu.dot_dimension_numbers<[1], [0], [0], [1], [0, 0, 1, 1], [], []>} : vector<16x128xf32>, vector<128x128xf32>, vector<16x128xf32> -> vector<16x128xf32>
      %c0_7 = arith.constant 0 : index
      %c0_8 = arith.constant 0 : index
      %12 = vector.load %arg4[%c0_7, %c0_8] : memref<1x128xf32, #tpu.memory_space<vmem>>, vector<1x128xf32>
      %13 = vector.broadcast %12 : vector<1x128xf32> to vector<16x128xf32>
      %14 = arith.addf %11, %13 : vector<16x128xf32>
      %cst_9 = arith.constant 0.000000e+00 : f32
      %15 = vector.broadcast %cst_9 : f32 to vector<16x128xf32>
      %16 = arith.maximumf %14, %15 : vector<16x128xf32>
      %c0_10 = arith.constant 0 : index
      %c0_11 = arith.constant 0 : index
      %17 = vector.load %arg10[%c0_10, %c0_11] : memref<16x128xf32, #tpu.memory_space<vmem>>, vector<16x128xf32>
      tpu.vector_store %arg10[%c0_10, %c0_11], %16 {strides = array<i32>} : memref<16x128xf32, #tpu.memory_space<vmem>>, vector<16x128xf32>,
    } else {
    }
    %c0_i32_1 = arith.constant 0 : i32
    %3 = arith.cmpi sgt, %arg1, %c0_i32_1 : i32
    %4 = arith.extui %3 : i1 to i32
    %c0_i32_2 = arith.constant 0 : i32
    %5 = arith.cmpi ne, %4, %c0_i32_2 : i32
    scf.if %5 {
      %c1_i32 = arith.constant 1 : i32
      %9 = arith.subi %arg1, %c1_i32 : i32
      %c0_i32_4 = arith.constant 0 : i32
      %10 = arith.maxsi %9, %c0_i32_4 : i32
      %11 = arith.index_cast %10 : i32 to index
      %c0 = arith.constant 0 : index
      %c0_5 = arith.constant 0 : index
      %12 = vector.load %arg5[%11, %c0, %c0_5] : memref<2x128x128xf32, #tpu.memory_space<vmem>>, vector<1x128x128xf32>
      %13 = vector.shape_cast %12 : vector<1x128x128xf32> to vector<128x128xf32>
      %14 = arith.index_cast %10 : i32 to index
      %c0_6 = arith.constant 0 : index
      %c0_7 = arith.constant 0 : index
      %15 = vector.load %arg6[%14, %c0_6, %c0_7] : memref<2x1x128xf32, #tpu.memory_space<vmem>>, vector<1x1x128xf32>
      %16 = vector.shape_cast %15 : vector<1x1x128xf32> to vector<1x128xf32>
      %c0_8 = arith.constant 0 : index
      %c0_9 = arith.constant 0 : index
      %17 = vector.load %arg10[%c0_8, %c0_9] : memref<16x128xf32, #tpu.memory_space<vmem>>, vector<16x128xf32>
      %cst = arith.constant dense<0.000000e+00> : vector<16x128xf32>
      %18 = tpu.matmul %17, %13, %cst {dimension_numbers = #tpu.dot_dimension_numbers<[1], [0], [0], [1], [0, 0, 1, 1], [], []>} : vector<16x128xf32>, vector<128x128xf32>, vector<16x128xf32> -> vector<16x128xf32>
      %19 = vector.broadcast %16 : vector<1x128xf32> to vector<16x128xf32>
      %20 = arith.addf %18, %19 : vector<16x128xf32>
      %cst_10 = arith.constant 0.000000e+00 : f32
      %21 = vector.broadcast %cst_10 : f32 to vector<16x128xf32>
      %22 = arith.maximumf %20, %21 : vector<16x128xf32>
      %c0_11 = arith.constant 0 : index
      %c0_12 = arith.constant 0 : index
      %23 = vector.load %arg10[%c0_11, %c0_12] : memref<16x128xf32, #tpu.memory_space<vmem>>, vector<16x128xf32>
      tpu.vector_store %arg10[%c0_11, %c0_12], %22 {strides = array<i32>} : memref<16x128xf32, #tpu.memory_space<vmem>>, vector<16x128xf32>,
    } else {
    }
    %c2_i32 = arith.constant 2 : i32
    %6 = arith.cmpi eq, %arg1, %c2_i32 : i32
    %7 = arith.extui %6 : i1 to i32
    %c0_i32_3 = arith.constant 0 : i32
    %8 = arith.cmpi ne, %7, %c0_i32_3 : i32
    scf.if %8 {
      %c0 = arith.constant 0 : index
      %c0_4 = arith.constant 0 : index
      %9 = vector.load %arg10[%c0, %c0_4] : memref<16x128xf32, #tpu.memory_space<vmem>>, vector<16x128xf32>
      %c0_5 = arith.constant 0 : index
      %c0_6 = arith.constant 0 : index
      %10 = vector.load %arg7[%c0_5, %c0_6] : memref<128x128xf32, #tpu.memory_space<vmem>>, vector<128x128xf32>
      %cst = arith.constant dense<0.000000e+00> : vector<16x128xf32>
      %11 = tpu.matmul %9, %10, %cst {dimension_numbers = #tpu.dot_dimension_numbers<[1], [0], [0], [1], [0, 0, 1, 1], [], []>} : vector<16x128xf32>, vector<128x128xf32>, vector<16x128xf32> -> vector<16x128xf32>
      %c0_7 = arith.constant 0 : index
      %c0_8 = arith.constant 0 : index
      %12 = vector.load %arg8[%c0_7, %c0_8] : memref<1x128xf32, #tpu.memory_space<vmem>>, vector<1x128xf32>
      %13 = vector.broadcast %12 : vector<1x128xf32> to vector<16x128xf32>
      %14 = arith.addf %11, %13 : vector<16x128xf32>
      %c0_9 = arith.constant 0 : index
      %c0_10 = arith.constant 0 : index
      %15 = vector.load %arg9[%c0_9, %c0_10] : memref<16x128xf32, #tpu.memory_space<vmem>>, vector<16x128xf32>
      tpu.vector_store %arg9[%c0_9, %c0_10], %14 {strides = array<i32>} : memref<16x128xf32, #tpu.memory_space<vmem>>, vector<16x128xf32>,
    } else {
    }
    return
  }
  func.func @transform_0(%arg0: i32, %arg1: i32) -> (i32, i32) {
    %c0_i32 = arith.constant 0 : i32
    %c0_i32_0 = arith.constant 0 : i32
    return %arg0, %c0_i32 : i32, i32
  }
  func.func @transform_1(%arg0: i32, %arg1: i32) -> (i32, i32) {
    %c0_i32 = arith.constant 0 : i32
    %c0_i32_0 = arith.constant 0 : i32
    %c0_i32_1 = arith.constant 0 : i32
    return %c0_i32, %c0_i32_0 : i32, i32
  }
  func.func @transform_2(%arg0: i32, %arg1: i32) -> (i32, i32) {
    %c0_i32 = arith.constant 0 : i32
    %c0_i32_0 = arith.constant 0 : i32
    %c0_i32_1 = arith.constant 0 : i32
    return %c0_i32, %c0_i32_0 : i32, i32
  }
  func.func @transform_3(%arg0: i32, %arg1: i32) -> (i32, i32, i32) {
    %c0_i32 = arith.constant 0 : i32
    %c0_i32_0 = arith.constant 0 : i32
    %c0_i32_1 = arith.constant 0 : i32
    %c0_i32_2 = arith.constant 0 : i32
    return %c0_i32, %c0_i32_0, %c0_i32_1 : i32, i32, i32
  }
  func.func @transform_4(%arg0: i32, %arg1: i32) -> (i32, i32, i32) {
    %c0_i32 = arith.constant 0 : i32
    %c0_i32_0 = arith.constant 0 : i32
    %c0_i32_1 = arith.constant 0 : i32
    %c0_i32_2 = arith.constant 0 : i32
    return %c0_i32, %c0_i32_0, %c0_i32_1 : i32, i32, i32
  }
  func.func @transform_5(%arg0: i32, %arg1: i32) -> (i32, i32) {
    %c0_i32 = arith.constant 0 : i32
    %c0_i32_0 = arith.constant 0 : i32
    %c0_i32_1 = arith.constant 0 : i32
    return %c0_i32, %c0_i32_0 : i32, i32
  }
  func.func @transform_6(%arg0: i32, %arg1: i32) -> (i32, i32) {
    %c0_i32 = arith.constant 0 : i32
    %c0_i32_0 = arith.constant 0 : i32
    %c0_i32_1 = arith.constant 0 : i32
    return %c0_i32, %c0_i32_0 : i32, i32
  }
  func.func @transform_7(%arg0: i32, %arg1: i32) -> (i32, i32) {
    %c0_i32 = arith.constant 0 : i32
    %c0_i32_0 = arith.constant 0 : i32
    return %arg0, %c0_i32 : i32, i32
  }
}

module attributes {stable_mosaic.version = 11 : i64} {
  func.func @_mlp_fused_kernel(%arg0: i32, %arg1: i32, %arg2: memref<16x128xf32, #tpu.memory_space<vmem>>, %arg3: memref<128x128xf32, #tpu.memory_space<vmem>>, %arg4: memref<1x128xf32, #tpu.memory_space<vmem>>, %arg5: memref<2x128x128xf32, #tpu.memory_space<vmem>>, %arg6: memref<2x1x128xf32, #tpu.memory_space<vmem>>, %arg7: memref<128x128xf32, #tpu.memory_space<vmem>>, %arg8: memref<1x128xf32, #tpu.memory_space<vmem>>, %arg9: memref<16x128xf32, #tpu.memory_space<vmem>>, %arg10: memref<16x128xf32, #tpu.memory_space<vmem>>) attributes {dimension_semantics = [#tpu.dimension_semantics<parallel>, #tpu.dimension_semantics<arbitrary>], iteration_bounds = array<i64: 1, 3>, scalar_prefetch = 0 : i64, scratch_operands = 1 : i64, tpu.core_type = #tpu.core_type<tc>, window_params = [{transform_indices = @transform_0, window_bounds = array<i64: 16, 128>}, {pipeline_mode = #tpu.pipeline_mode<synchronous>, transform_indices = @transform_1, window_bounds = array<i64: 128, 128>}, {pipeline_mode = #tpu.pipeline_mode<synchronous>, transform_indices = @transform_2, window_bounds = array<i64: 1, 128>}, {pipeline_mode = #tpu.pipeline_mode<synchronous>, transform_indices = @transform_3, window_bounds = array<i64: 2, 128, 128>}, {pipeline_mode = #tpu.pipeline_mode<synchronous>, transform_indices = @transform_4, window_bounds = array<i64: 2, 1, 128>}, {pipeline_mode = #tpu.pipeline_mode<synchronous>, transform_indices = @transform_5, window_bounds = array<i64: 128, 128>}, {pipeline_mode = #tpu.pipeline_mode<synchronous>, transform_indices = @transform_6, window_bounds = array<i64: 1, 128>}, {transform_indices = @transform_7, window_bounds = array<i64: 16, 128>}]} {
    %c0_i32 = arith.constant 0 : i32
    %0 = arith.cmpi eq, %arg1, %c0_i32 : i32
    %1 = arith.extui %0 : i1 to i32
    %c0_i32_0 = arith.constant 0 : i32
    %2 = arith.cmpi ne, %1, %c0_i32_0 : i32
    scf.if %2 {
      %c0 = arith.constant 0 : index
      %c0_4 = arith.constant 0 : index
      %9 = vector.load %arg2[%c0, %c0_4] : memref<16x128xf32, #tpu.memory_space<vmem>>, vector<16x128xf32>
      %c0_5 = arith.constant 0 : index
      %c0_6 = arith.constant 0 : index
      %10 = vector.load %arg3[%c0_5, %c0_6] : memref<128x128xf32, #tpu.memory_space<vmem>>, vector<128x128xf32>
      %cst = arith.constant dense<0.000000e+00> : vector<16x128xf32>
      %11 = tpu.matmul %9, %10, %cst {dimension_numbers = #tpu.dot_dimension_numbers<[1], [0], [0], [1], [0, 0, 1, 1], [], []>} : vector<16x128xf32>, vector<128x128xf32>, vector<16x128xf32> -> vector<16x128xf32>
      %c0_7 = arith.constant 0 : index
      %c0_8 = arith.constant 0 : index
      %12 = vector.load %arg4[%c0_7, %c0_8] : memref<1x128xf32, #tpu.memory_space<vmem>>, vector<1x128xf32>
      %13 = vector.broadcast %12 : vector<1x128xf32> to vector<16x128xf32>
      %14 = arith.addf %11, %13 : vector<16x128xf32>
      %cst_9 = arith.constant 0.000000e+00 : f32
      %15 = vector.broadcast %cst_9 : f32 to vector<16x128xf32>
      %16 = arith.maximumf %14, %15 : vector<16x128xf32>
      %c0_10 = arith.constant 0 : index
      %c0_11 = arith.constant 0 : index
      %17 = vector.load %arg10[%c0_10, %c0_11] : memref<16x128xf32, #tpu.memory_space<vmem>>, vector<16x128xf32>
      tpu.vector_store %arg10[%c0_10, %c0_11], %16 {strides = array<i32>} : memref<16x128xf32, #tpu.memory_space<vmem>>, vector<16x128xf32>,
    } else {
    }
    %c0_i32_1 = arith.constant 0 : i32
    %3 = arith.cmpi sgt, %arg1, %c0_i32_1 : i32
    %4 = arith.extui %3 : i1 to i32
    %c0_i32_2 = arith.constant 0 : i32
    %5 = arith.cmpi ne, %4, %c0_i32_2 : i32
    scf.if %5 {
      %c1_i32 = arith.constant 1 : i32
      %9 = arith.subi %arg1, %c1_i32 : i32
      %c0_i32_4 = arith.constant 0 : i32
      %10 = arith.maxsi %9, %c0_i32_4 : i32
      %11 = arith.index_cast %10 : i32 to index
      %c0 = arith.constant 0 : index
      %c0_5 = arith.constant 0 : index
      %12 = vector.load %arg5[%11, %c0, %c0_5] : memref<2x128x128xf32, #tpu.memory_space<vmem>>, vector<1x128x128xf32>
      %13 = vector.shape_cast %12 : vector<1x128x128xf32> to vector<128x128xf32>
      %14 = arith.index_cast %10 : i32 to index
      %c0_6 = arith.constant 0 : index
      %c0_7 = arith.constant 0 : index
      %15 = vector.load %arg6[%14, %c0_6, %c0_7] : memref<2x1x128xf32, #tpu.memory_space<vmem>>, vector<1x1x128xf32>
      %16 = vector.shape_cast %15 : vector<1x1x128xf32> to vector<1x128xf32>
      %c0_8 = arith.constant 0 : index
      %c0_9 = arith.constant 0 : index
      %17 = vector.load %arg10[%c0_8, %c0_9] : memref<16x128xf32, #tpu.memory_space<vmem>>, vector<16x128xf32>
      %cst = arith.constant dense<0.000000e+00> : vector<16x128xf32>
      %18 = tpu.matmul %17, %13, %cst {dimension_numbers = #tpu.dot_dimension_numbers<[1], [0], [0], [1], [0, 0, 1, 1], [], []>} : vector<16x128xf32>, vector<128x128xf32>, vector<16x128xf32> -> vector<16x128xf32>
      %19 = vector.broadcast %16 : vector<1x128xf32> to vector<16x128xf32>
      %20 = arith.addf %18, %19 : vector<16x128xf32>
      %cst_10 = arith.constant 0.000000e+00 : f32
      %21 = vector.broadcast %cst_10 : f32 to vector<16x128xf32>
      %22 = arith.maximumf %20, %21 : vector<16x128xf32>
      %c0_11 = arith.constant 0 : index
      %c0_12 = arith.constant 0 : index
      %23 = vector.load %arg10[%c0_11, %c0_12] : memref<16x128xf32, #tpu.memory_space<vmem>>, vector<16x128xf32>
      tpu.vector_store %arg10[%c0_11, %c0_12], %22 {strides = array<i32>} : memref<16x128xf32, #tpu.memory_space<vmem>>, vector<16x128xf32>,
    } else {
    }
    %c2_i32 = arith.constant 2 : i32
    %6 = arith.cmpi eq, %arg1, %c2_i32 : i32
    %7 = arith.extui %6 : i1 to i32
    %c0_i32_3 = arith.constant 0 : i32
    %8 = arith.cmpi ne, %7, %c0_i32_3 : i32
    scf.if %8 {
      %c0 = arith.constant 0 : index
      %c0_4 = arith.constant 0 : index
      %9 = vector.load %arg10[%c0, %c0_4] : memref<16x128xf32, #tpu.memory_space<vmem>>, vector<16x128xf32>
      %c0_5 = arith.constant 0 : index
      %c0_6 = arith.constant 0 : index
      %10 = vector.load %arg7[%c0_5, %c0_6] : memref<128x128xf32, #tpu.memory_space<vmem>>, vector<128x128xf32>
      %cst = arith.constant dense<0.000000e+00> : vector<16x128xf32>
      %11 = tpu.matmul %9, %10, %cst {dimension_numbers = #tpu.dot_dimension_numbers<[1], [0], [0], [1], [0, 0, 1, 1], [], []>} : vector<16x128xf32>, vector<128x128xf32>, vector<16x128xf32> -> vector<16x128xf32>
      %c0_7 = arith.constant 0 : index
      %c0_8 = arith.constant 0 : index
      %12 = vector.load %arg8[%c0_7, %c0_8] : memref<1x128xf32, #tpu.memory_space<vmem>>, vector<1x128xf32>
      %13 = vector.broadcast %12 : vector<1x128xf32> to vector<16x128xf32>
      %14 = arith.addf %11, %13 : vector<16x128xf32>
      %c0_9 = arith.constant 0 : index
      %c0_10 = arith.constant 0 : index
      %15 = vector.load %arg9[%c0_9, %c0_10] : memref<16x128xf32, #tpu.memory_space<vmem>>, vector<16x128xf32>
      tpu.vector_store %arg9[%c0_9, %c0_10], %14 {strides = array<i32>} : memref<16x128xf32, #tpu.memory_space<vmem>>, vector<16x128xf32>,
    } else {
    }
    return
  }
  func.func @transform_0(%arg0: i32, %arg1: i32) -> (i32, i32) {
    %c0_i32 = arith.constant 0 : i32
    %c0_i32_0 = arith.constant 0 : i32
    return %arg0, %c0_i32 : i32, i32
  }
  func.func @transform_1(%arg0: i32, %arg1: i32) -> (i32, i32) {
    %c0_i32 = arith.constant 0 : i32
    %c0_i32_0 = arith.constant 0 : i32
    %c0_i32_1 = arith.constant 0 : i32
    return %c0_i32, %c0_i32_0 : i32, i32
  }
  func.func @transform_2(%arg0: i32, %arg1: i32) -> (i32, i32) {
    %c0_i32 = arith.constant 0 : i32
    %c0_i32_0 = arith.constant 0 : i32
    %c0_i32_1 = arith.constant 0 : i32
    return %c0_i32, %c0_i32_0 : i32, i32
  }
  func.func @transform_3(%arg0: i32, %arg1: i32) -> (i32, i32, i32) {
    %c0_i32 = arith.constant 0 : i32
    %c0_i32_0 = arith.constant 0 : i32
    %c0_i32_1 = arith.constant 0 : i32
    %c0_i32_2 = arith.constant 0 : i32
    return %c0_i32, %c0_i32_0, %c0_i32_1 : i32, i32, i32
  }
  func.func @transform_4(%arg0: i32, %arg1: i32) -> (i32, i32, i32) {
    %c0_i32 = arith.constant 0 : i32
    %c0_i32_0 = arith.constant 0 : i32
    %c0_i32_1 = arith.constant 0 : i32
    %c0_i32_2 = arith.constant 0 : i32
    return %c0_i32, %c0_i32_0, %c0_i32_1 : i32, i32, i32
  }
  func.func @transform_5(%arg0: i32, %arg1: i32) -> (i32, i32) {
    %c0_i32 = arith.constant 0 : i32
    %c0_i32_0 = arith.constant 0 : i32
    %c0_i32_1 = arith.constant 0 : i32
    return %c0_i32, %c0_i32_0 : i32, i32
  }
  func.func @transform_6(%arg0: i32, %arg1: i32) -> (i32, i32) {
    %c0_i32 = arith.constant 0 : i32
    %c0_i32_0 = arith.constant 0 : i32
    %c0_i32_1 = arith.constant 0 : i32
    return %c0_i32, %c0_i32_0 : i32, i32
  }
  func.func @transform_7(%arg0: i32, %arg1: i32) -> (i32, i32) {
    %c0_i32 = arith.constant 0 : i32
    %c0_i32_0 = arith.constant 0 : i32
    return %arg0, %c0_i32 : i32, i32
  }
}

</mosaic_0001>

<llo_original>
// kernel: tpu_custom_call.1
$region0: #{tpu_custom_call.1}
  #allocation0 [shape = 'u32[]', space=smem, size = 0x4, offset = 0x4, fixed_abs, tag = 'smem constant byte address 0x4 - core index']
  #allocation1 [shape = 'u32[144,128]{1,0:T(1,128)}', space=vmem, size = 0x12000, scoped, tag = 'internal scratch']
  #allocation2 [shape = 'f32[16,128]{1,0:T(8,128)}', space=vmem, size = 0x2000, scoped, tag = 'scratch operand']
  %s0 = inlined_call_operand.hbm [shape: f32[16,128], index: 0, kind: input, shape index: {}]
  %s1 = inlined_call_operand.hbm [shape: f32[128,128], index: 1, kind: input, shape index: {}]
  %s2 = inlined_call_operand.vmem [shape: f32[1,128], index: 2, kind: input, shape index: {}]
  %s3 = inlined_call_operand.hbm [shape: f32[2,128,128], index: 3, kind: input, shape index: {}]
  %s4 = inlined_call_operand.vmem [shape: f32[2,1,128], index: 4, kind: input, shape index: {}]
  %s5 = inlined_call_operand.hbm [shape: f32[128,128], index: 5, kind: input, shape index: {}]
  %s6 = inlined_call_operand.vmem [shape: f32[1,128], index: 6, kind: input, shape index: {}]
  %s7 = inlined_call_operand.hbm [shape: f32[16,128], index: 7, kind: output, shape index: {}]
  %s8 = sld [smem:[#allocation0]]
  $region89: #{tpu_custom_call.1} parent=0
    _
  %s10 = ssub.s32 1, %s8
  %s11 = scalar_select 0, %s10, %s8
  $region1: #{tpu_custom_call.1} parent=0
    #allocation3 [shape = 'u8[8192]{0}', space=vmem, size = 0x2000, scoped, tag = 'input window, operand 0, single buffered']
    #allocation4 [shape = 's32[2]{0}', space=sflag, size = 0x8, scoped, tag = 'scoped memory for tpu_custom_call.1']
    #allocation5 [shape = 's32[2]{0}', space=sflag, size = 0x8, scoped, tag = 'scoped memory for tpu_custom_call.1']
    #allocation6 [shape = 'u8[65536]{0}', space=vmem, size = 0x10000, scoped, tag = 'input window, operand 1, single buffered']
    #allocation7 [shape = 's32[1]{0}', space=sflag, size = 0x4, scoped, tag = 'scoped memory for tpu_custom_call.1']
    #allocation8 [shape = 'u8[131072]{0}', space=vmem, size = 0x20000, scoped, tag = 'input window, operand 3, single buffered']
    #allocation9 [shape = 'u8[65536]{0}', space=vmem, size = 0x10000, scoped, tag = 'input window, operand 5, single buffered']
    #allocation10 [shape = 's32[1]{0}', space=sflag, size = 0x4, scoped, tag = 'scoped memory for tpu_custom_call.1']
    #allocation11 [shape = 'u8[8192]{0}', space=vmem, size = 0x2000, scoped, tag = 'output window, operand 0, single buffered']
    %12 = vsyncpa [#allocation4], 0
    %13 = vsyncpa [#allocation7], 0
    %14 = vsyncpa [#allocation10], 0
    %15 = vsyncpa [#allocation5], 0
    loop: start=0, step=1, limit=5
    $region2: #{tpu_custom_call.1} parent=1 // loop_pre_header
      _
    $region3: #{tpu_custom_call.1} parent=1 // loop_header
      %s17 = sphi 0, %s21
      %p18 = scmp.ge.s32.totalorder %s17, 5
      %s24 = sphi 0, %s36
      %s25 = sphi 0, %s32
      %s26 = sphi 0, %s24
      %s27 = sphi 0, %s25
      %s28 = sphi 0, %s26
      %s29 = sphi 0, %s27
      %s39 = sphi 0, %s41
      %s42 = sphi 0, %s39
      %s43 = sphi 0, %s42
      %s59 = sphi 0, %s43
      %s63 = sphi 0, %s63
      %s65 = sphi 0, %s63
      %s66 = sphi 0, %s65
      %s80 = sphi 0, %s66
      %s84 = sphi 0, %s84
      %s86 = sphi 0, %s84
      %s87 = sphi 0, %s86
      %s101 = sphi 0, %s87
      %s105 = sphi 0, %s105
      %s107 = sphi 0, %s105
      %s108 = sphi 0, %s107
      %s122 = sphi 0, %s108
      %s126 = sphi 0, %s126
      %s128 = sphi 0, %s126
      %s129 = sphi 0, %s128
      %s143 = sphi 0, %s129
      %s147 = sphi 0, %s147
      %s149 = sphi 0, %s147
      %s150 = sphi 0, %s149
      %s164 = sphi 0, %s150
      %s168 = sphi 0, %s168
      %s170 = sphi 0, %s168
      %s171 = sphi 0, %s170
      %s185 = sphi 0, %s171
      %s191 = sphi 0, %s193
      %s194 = sphi 0, %s191
      %s195 = sphi 0, %s194
      %s211 = sphi 0, %s195
    $region4: #{tpu_custom_call.1} parent=1 // loop_header_branch
      %20 = sbr.rel (%p18) target = $region8
    $region5: #{tpu_custom_call.1} parent=1 // loop_body
      %s22 = ssub.s32 %s17, 1
      %s23 = ssub.s32 %s17, 2
      %s30 = sadd.s32 1, %s25
      %p31 = scmp.ge.s32.totalorder %s30, 3
      %s32 = scalar_select %p31, 0, %s30
      %s33 = sadd.s32 1, %s24
      %s34 = scalar_select %p31, %s33, %s24
      %p35 = scmp.ge.s32.totalorder %s34, 1
      %s36 = scalar_select %p35, 0, %s34
      %s37 = ssub.s32 %s24, %s36
      %p38 = scmp.eq.s32.totalorder %s37, 0
      %s40 = sadd.s32 %s39, 1
      %s41 = scalar_select %p38, %s39, %s40
      %p44 = pneg %p38
      %p45 = scmp.eq.s32.totalorder %s17, 2
      %p46 = por %p44, %p45
      %p47 = scmp.ne.s32.totalorder %s39, %s42
      %p48 = scmp.eq.s32.totalorder %s17, 0
      %p49 = por %p47, %p48
      %p50 = scmp.ne.s32.totalorder %s39, %s42
      %p51 = scmp.eq.s32.totalorder %s22, 2
      %p52 = por %p50, %p51
      %p53 = scmp.ne.s32.totalorder %s42, %s43
      %p54 = scmp.eq.s32.totalorder %s22, 0
      %p55 = por %p53, %p54
      %p56 = scmp.ne.s32.totalorder %s42, %s43
      %p57 = scmp.eq.s32.totalorder %s23, 2
      %p58 = por %p56, %p57
      %p60 = scmp.ne.s32.totalorder %s43, %s59
      %p61 = scmp.eq.s32.totalorder %s23, 0
      %p62 = por %p60, %p61
      %s64 = sadd.s32 %s63, 1
      %p67 = scmp.eq.s32.totalorder %s17, 2
      %p68 = scmp.ne.s32.totalorder %s63, %s65
      %p69 = scmp.eq.s32.totalorder %s17, 0
      %p70 = por %p68, %p69
      %p71 = scmp.ne.s32.totalorder %s63, %s65
      %p72 = scmp.eq.s32.totalorder %s22, 2
      %p73 = por %p71, %p72
      %p74 = scmp.ne.s32.totalorder %s65, %s66
      %p75 = scmp.eq.s32.totalorder %s22, 0
      %p76 = por %p74, %p75
      %p77 = scmp.ne.s32.totalorder %s65, %s66
      %p78 = scmp.eq.s32.totalorder %s23, 2
      %p79 = por %p77, %p78
      %p81 = scmp.ne.s32.totalorder %s66, %s80
      %p82 = scmp.eq.s32.totalorder %s23, 0
      %p83 = por %p81, %p82
      %s85 = sadd.s32 %s84, 1
      %p88 = scmp.eq.s32.totalorder %s17, 2
      %p89 = scmp.ne.s32.totalorder %s84, %s86
      %p90 = scmp.eq.s32.totalorder %s17, 0
      %p91 = por %p89, %p90
      %p92 = scmp.ne.s32.totalorder %s84, %s86
      %p93 = scmp.eq.s32.totalorder %s22, 2
      %p94 = por %p92, %p93
      %p95 = scmp.ne.s32.totalorder %s86, %s87
      %p96 = scmp.eq.s32.totalorder %s22, 0
      %p97 = por %p95, %p96
      %p98 = scmp.ne.s32.totalorder %s86, %s87
      %p99 = scmp.eq.s32.totalorder %s23, 2
      %p100 = por %p98, %p99
      %p102 = scmp.ne.s32.totalorder %s87, %s101
      %p103 = scmp.eq.s32.totalorder %s23, 0
      %p104 = por %p102, %p103
      %s106 = sadd.s32 %s105, 1
      %p109 = scmp.eq.s32.totalorder %s17, 2
      %p110 = scmp.ne.s32.totalorder %s105, %s107
      %p111 = scmp.eq.s32.totalorder %s17, 0
      %p112 = por %p110, %p111
      %p113 = scmp.ne.s32.totalorder %s105, %s107
      %p114 = scmp.eq.s32.totalorder %s22, 2
      %p115 = por %p113, %p114
      %p116 = scmp.ne.s32.totalorder %s107, %s108
      %p117 = scmp.eq.s32.totalorder %s22, 0
      %p118 = por %p116, %p117
      %p119 = scmp.ne.s32.totalorder %s107, %s108
      %p120 = scmp.eq.s32.totalorder %s23, 2
      %p121 = por %p119, %p120
      %p123 = scmp.ne.s32.totalorder %s108, %s122
      %p124 = scmp.eq.s32.totalorder %s23, 0
      %p125 = por %p123, %p124
      %s127 = sadd.s32 %s126, 1
      %p130 = scmp.eq.s32.totalorder %s17, 2
      %p131 = scmp.ne.s32.totalorder %s126, %s128
      %p132 = scmp.eq.s32.totalorder %s17, 0
      %p133 = por %p131, %p132
      %p134 = scmp.ne.s32.totalorder %s126, %s128
      %p135 = scmp.eq.s32.totalorder %s22, 2
      %p136 = por %p134, %p135
      %p137 = scmp.ne.s32.totalorder %s128, %s129
      %p138 = scmp.eq.s32.totalorder %s22, 0
      %p139 = por %p137, %p138
      %p140 = scmp.ne.s32.totalorder %s128, %s129
      %p141 = scmp.eq.s32.totalorder %s23, 2
      %p142 = por %p140, %p141
      %p144 = scmp.ne.s32.totalorder %s129, %s143
      %p145 = scmp.eq.s32.totalorder %s23, 0
      %p146 = por %p144, %p145
      %s148 = sadd.s32 %s147, 1
      %p151 = scmp.eq.s32.totalorder %s17, 2
      %p152 = scmp.ne.s32.totalorder %s147, %s149
      %p153 = scmp.eq.s32.totalorder %s17, 0
      %p154 = por %p152, %p153
      %p155 = scmp.ne.s32.totalorder %s147, %s149
      %p156 = scmp.eq.s32.totalorder %s22, 2
      %p157 = por %p155, %p156
      %p158 = scmp.ne.s32.totalorder %s149, %s150
      %p159 = scmp.eq.s32.totalorder %s22, 0
      %p160 = por %p158, %p159
      %p161 = scmp.ne.s32.totalorder %s149, %s150
      %p162 = scmp.eq.s32.totalorder %s23, 2
      %p163 = por %p161, %p162
      %p165 = scmp.ne.s32.totalorder %s150, %s164
      %p166 = scmp.eq.s32.totalorder %s23, 0
      %p167 = por %p165, %p166
      %s169 = sadd.s32 %s168, 1
      %p172 = scmp.eq.s32.totalorder %s17, 2
      %p173 = scmp.ne.s32.totalorder %s168, %s170
      %p174 = scmp.eq.s32.totalorder %s17, 0
      %p175 = por %p173, %p174
      %p176 = scmp.ne.s32.totalorder %s168, %s170
      %p177 = scmp.eq.s32.totalorder %s22, 2
      %p178 = por %p176, %p177
      %p179 = scmp.ne.s32.totalorder %s170, %s171
      %p180 = scmp.eq.s32.totalorder %s22, 0
      %p181 = por %p179, %p180
      %p182 = scmp.ne.s32.totalorder %s170, %s171
      %p183 = scmp.eq.s32.totalorder %s23, 2
      %p184 = por %p182, %p183
      %p186 = scmp.ne.s32.totalorder %s171, %s185
      %p187 = scmp.eq.s32.totalorder %s23, 0
      %p188 = por %p186, %p187
      %s189 = ssub.s32 %s24, %s36
      %p190 = scmp.eq.s32.totalorder %s189, 0
      %s192 = sadd.s32 %s191, 1
      %s193 = scalar_select %p190, %s191, %s192
      %p196 = pneg %p190
      %p197 = scmp.eq.s32.totalorder %s17, 2
      %p198 = por %p196, %p197
      %p199 = scmp.ne.s32.totalorder %s191, %s194
      %p200 = scmp.eq.s32.totalorder %s17, 0
      %p201 = por %p199, %p200
      %p202 = scmp.ne.s32.totalorder %s191, %s194
      %p203 = scmp.eq.s32.totalorder %s22, 2
      %p204 = por %p202, %p203
      %p205 = scmp.ne.s32.totalorder %s194, %s195
      %p206 = scmp.eq.s32.totalorder %s22, 0
      %p207 = por %p205, %p206
      %p208 = scmp.ne.s32.totalorder %s194, %s195
      %p209 = scmp.eq.s32.totalorder %s23, 2
      %p210 = por %p208, %p209
      %p212 = scmp.ne.s32.totalorder %s195, %s211
      %p213 = scmp.eq.s32.totalorder %s23, 0
      %p214 = por %p212, %p213
      %p215 = scmp.le.s32.totalorder 1, %s17
      %p216 = scmp.lt.s32.totalorder %s17, 4
      %p217 = pnand %p215, %p216
      %p218 = pneg %p217
      // Predicated region
      $region9: #{tpu_custom_call.1} parent=5 // pred_check
        _
      $region10: #{tpu_custom_call.1} parent=5 // pred_check_branch
        %220 = sbr.rel (%p217) target = $region12
      $region11: #{tpu_custom_call.1} parent=5 // pred_region
        %s221 = ssub.s32 %s17, 1
        // Predicated region
        $region13: #{tpu_custom_call.1} parent=11 // pred_check
          %p222 = pneg %p55
        $region14: #{tpu_custom_call.1} parent=11 // pred_check_branch
          %224 = sbr.rel (%p222) target = $region16
        $region15: #{tpu_custom_call.1} parent=11 // pred_region
          %s225 = smul.u32 2, %s26
          %s227 = ssub.s32 256, 256
          %228 = vsyncadd [#allocation4], %s227
          %s229 = smul.addr %s225, 128
          %s230 = scalar_lea.hbm %s0, %s229
          %s231 = sshll.u32 [#allocation3], 4
          %s232 = int_to_ptr.vmem [resolvable:$true] %s231
          %237 = dma.hbm_to_vmem [thread:$0]  %s230, 256, %s232, [#allocation4], 128, 128, 8
        $region16: #{tpu_custom_call.1} parent=11 // pred_fallthru
          _
        // Predicated region
        $region17: #{tpu_custom_call.1} parent=11 // pred_check
          %p238 = pneg %p76
        $region18: #{tpu_custom_call.1} parent=11 // pred_check_branch
          %240 = sbr.rel (%p238) target = $region20
        $region19: #{tpu_custom_call.1} parent=11 // pred_region
          %s242 = ssub.s32 2048, 2048
          %243 = vsyncadd [#allocation7], %s242
          %s244 = sshll.u32 [#allocation6], 4
          %s245 = int_to_ptr.vmem [resolvable:$true] %s244
          %250 = dma.hbm_to_vmem [thread:$0]  %s1, 2048, %s245, [#allocation7], 128, 128, 8
        $region20: #{tpu_custom_call.1} parent=11 // pred_fallthru
          _
        // Predicated region
        $region21: #{tpu_custom_call.1} parent=11 // pred_check
          %p251 = pneg %p97
        $region22: #{tpu_custom_call.1} parent=11 // pred_check_branch
          %253 = sbr.rel (%p251) target = $region24
        $region23: #{tpu_custom_call.1} parent=11 // pred_region
          _
        $region24: #{tpu_custom_call.1} parent=11 // pred_fallthru
          _
        // Predicated region
        $region25: #{tpu_custom_call.1} parent=11 // pred_check
          %p254 = pneg %p118
        $region26: #{tpu_custom_call.1} parent=11 // pred_check_branch
          %256 = sbr.rel (%p254) target = $region28
        $region27: #{tpu_custom_call.1} parent=11 // pred_region
          %s258 = ssub.s32 4096, 4096
          %259 = vsyncadd [#allocation7], %s258
          %s260 = sshll.u32 [#allocation8], 4
          %s261 = int_to_ptr.vmem [resolvable:$true] %s260
          %266 = dma.hbm_to_vmem [thread:$0]  %s3, 4096, %s261, [#allocation7], 128, 128, 8
        $region28: #{tpu_custom_call.1} parent=11 // pred_fallthru
          _
        // Predicated region
        $region29: #{tpu_custom_call.1} parent=11 // pred_check
          %p267 = pneg %p139
        $region30: #{tpu_custom_call.1} parent=11 // pred_check_branch
          %269 = sbr.rel (%p267) target = $region32
        $region31: #{tpu_custom_call.1} parent=11 // pred_region
          _
        $region32: #{tpu_custom_call.1} parent=11 // pred_fallthru
          _
        // Predicated region
        $region33: #{tpu_custom_call.1} parent=11 // pred_check
          %p270 = pneg %p160
        $region34: #{tpu_custom_call.1} parent=11 // pred_check_branch
          %272 = sbr.rel (%p270) target = $region36
        $region35: #{tpu_custom_call.1} parent=11 // pred_region
          %s274 = ssub.s32 2048, 2048
          %275 = vsyncadd [#allocation10], %s274
          %s276 = sshll.u32 [#allocation9], 4
          %s277 = int_to_ptr.vmem [resolvable:$true] %s276
          %282 = dma.hbm_to_vmem [thread:$0]  %s5, 2048, %s277, [#allocation10], 128, 128, 8
        $region36: #{tpu_custom_call.1} parent=11 // pred_fallthru
          _
        // Predicated region
        $region37: #{tpu_custom_call.1} parent=11 // pred_check
          %p283 = pneg %p181
        $region38: #{tpu_custom_call.1} parent=11 // pred_check_branch
          %285 = sbr.rel (%p283) target = $region40
        $region39: #{tpu_custom_call.1} parent=11 // pred_region
          _
        $region40: #{tpu_custom_call.1} parent=11 // pred_fallthru
          _
      $region12: #{tpu_custom_call.1} parent=5 // pred_fallthru
        _
      %p286 = scmp.lt.s32.totalorder %s17, 3
      // Predicated region
      $region41: #{tpu_custom_call.1} parent=5 // pred_check
        %p287 = pneg %p286
      $region42: #{tpu_custom_call.1} parent=5 // pred_check_branch
        %289 = sbr.rel (%p287) target = $region44
      $region43: #{tpu_custom_call.1} parent=5 // pred_region
        _
      $region44: #{tpu_custom_call.1} parent=5 // pred_fallthru
        _
      %p290 = scmp.le.s32.totalorder 1, %s17
      %p291 = scmp.lt.s32.totalorder %s17, 4
      %p292 = pnand %p290, %p291
      %p293 = pneg %p292
      // Predicated region
      $region45: #{tpu_custom_call.1} parent=5 // pred_check
        _
      $region46: #{tpu_custom_call.1} parent=5 // pred_check_branch
        %295 = sbr.rel (%p292) target = $region48
      $region47: #{tpu_custom_call.1} parent=5 // pred_region
        %s296 = ssub.s32 %s17, 1
        // Predicated region
        $region49: #{tpu_custom_call.1} parent=47 // pred_check
          %p297 = pneg %p55
        $region50: #{tpu_custom_call.1} parent=47 // pred_check_branch
          %299 = sbr.rel (%p297) target = $region52
        $region51: #{tpu_custom_call.1} parent=47 // pred_region
          %300 = dma.done [#allocation4], 256
        $region52: #{tpu_custom_call.1} parent=47 // pred_fallthru
          _
        // Predicated region
        $region53: #{tpu_custom_call.1} parent=47 // pred_check
          %p301 = pneg %p76
        $region54: #{tpu_custom_call.1} parent=47 // pred_check_branch
          %303 = sbr.rel (%p301) target = $region56
        $region55: #{tpu_custom_call.1} parent=47 // pred_region
          %304 = dma.done [#allocation7], 2048
        $region56: #{tpu_custom_call.1} parent=47 // pred_fallthru
          _
        // Predicated region
        $region57: #{tpu_custom_call.1} parent=47 // pred_check
          %p305 = pneg %p118
        $region58: #{tpu_custom_call.1} parent=47 // pred_check_branch
          %307 = sbr.rel (%p305) target = $region60
        $region59: #{tpu_custom_call.1} parent=47 // pred_region
          %308 = dma.done [#allocation7], 4096
        $region60: #{tpu_custom_call.1} parent=47 // pred_fallthru
          _
        // Predicated region
        $region61: #{tpu_custom_call.1} parent=47 // pred_check
          %p309 = pneg %p160
        $region62: #{tpu_custom_call.1} parent=47 // pred_check_branch
          %311 = sbr.rel (%p309) target = $region64
        $region63: #{tpu_custom_call.1} parent=47 // pred_region
          %312 = dma.done [#allocation10], 2048
        $region64: #{tpu_custom_call.1} parent=47 // pred_fallthru
          _
        %p313 = pneg %p55
        %p314 = pneg %p52
        %p315 = pneg %p76
        %p316 = pneg %p73
        %p317 = pneg %p97
        %p318 = pneg %p94
        %p319 = pneg %p118
        %p320 = pneg %p115
        %p321 = pneg %p139
        %p322 = pneg %p136
        %p323 = pneg %p160
        %p324 = pneg %p157
        %p325 = pneg %p181
        %p326 = pneg %p178
        %p327 = pneg %p207
        %p328 = pneg %p204
        %s329 = smul.u32 2, %s26
        %s330 = smul.u32 2, %s26
        %p331 = scmp.eq.s32.totalorder %s27, 0
        // Predicated region
        $region65: #{tpu_custom_call.1} parent=47 // pred_check
          %p332 = pneg %p331
        $region66: #{tpu_custom_call.1} parent=47 // pred_check_branch
          %334 = sbr.rel (%p332) target = $region68
        $region67: #{tpu_custom_call.1} parent=47 // pred_region
          %v335 = vld [vmem:[#allocation3] sm:$0xff]
          %v336 = vld [vmem:[#allocation3 + $0x8] sm:$0xff]
          %v337 = vld [vmem:[#allocation6] sm:$0xff]
          %v338 = vld [vmem:[#allocation6 + $0x8] sm:$0xff]
          %v339 = vld [vmem:[#allocation6 + $0x10] sm:$0xff]
          %v340 = vld [vmem:[#allocation6 + $0x18] sm:$0xff]
          %v341 = vld [vmem:[#allocation6 + $0x20] sm:$0xff]
          %v342 = vld [vmem:[#allocation6 + $0x28] sm:$0xff]
          %v343 = vld [vmem:[#allocation6 + $0x30] sm:$0xff]
          %v344 = vld [vmem:[#allocation6 + $0x38] sm:$0xff]
          %v345 = vld [vmem:[#allocation6 + $0x40] sm:$0xff]
          %v346 = vld [vmem:[#allocation6 + $0x48] sm:$0xff]
          %v347 = vld [vmem:[#allocation6 + $0x50] sm:$0xff]
          %v348 = vld [vmem:[#allocation6 + $0x58] sm:$0xff]
          %v349 = vld [vmem:[#allocation6 + $0x60] sm:$0xff]
          %v350 = vld [vmem:[#allocation6 + $0x68] sm:$0xff]
          %v351 = vld [vmem:[#allocation6 + $0x70] sm:$0xff]
          %v352 = vld [vmem:[#allocation6 + $0x78] sm:$0xff]
          %v353 = vld [vmem:[%s2] sm:$0x1]
          %v355 = vlaneseq
          %v356 = vshrl.u32 %v355, 7
          %v357 = vsub.s32 0, %v356
          %v358 = vrot.slane %v353, %v357
          %360 = vmatprep.subr.mxu0 0.0
          %361 = vmatpush1.msra.mxu0 %v352
          %362 = vmatprep.subr.mxu0 0.0
          %363 = vmatpush1.msra.mxu0 %v351
          %364 = vmatprep.subr.mxu0 0.0
          %365 = vmatpush1.msra.mxu0 %v350
          %366 = vmatprep.subr.mxu0 0.0
          %367 = vmatpush1.msra.mxu0 %v349
          %368 = vmatprep.subr.mxu0 0.0
          %369 = vmatpush1.msra.mxu0 %v348
          %370 = vmatprep.subr.mxu0 0.0
          %371 = vmatpush1.msra.mxu0 %v347
          %372 = vmatprep.subr.mxu0 0.0
          %373 = vmatpush1.msra.mxu0 %v346
          %374 = vmatprep.subr.mxu0 0.0
          %375 = vmatpush1.msra.mxu0 %v345
          %376 = vmatprep.subr.mxu0 0.0
          %377 = vmatpush1.msra.mxu0 %v344
          %378 = vmatprep.subr.mxu0 0.0
          %379 = vmatpush1.msra.mxu0 %v343
          %380 = vmatprep.subr.mxu0 0.0
          %381 = vmatpush1.msra.mxu0 %v342
          %382 = vmatprep.subr.mxu0 0.0
          %383 = vmatpush1.msra.mxu0 %v341
          %384 = vmatprep.subr.mxu0 0.0
          %385 = vmatpush1.msra.mxu0 %v340
          %386 = vmatprep.subr.mxu0 0.0
          %387 = vmatpush1.msra.mxu0 %v339
          %388 = vmatprep.subr.mxu0 0.0
          %389 = vmatpush1.msra.mxu0 %v338
          %390 = vmatprep.subr.mxu0 0.0
          %391 = vmatpush1.msra.mxu0 %v337
          %392 = vmatprep.subr.mxu0 0.0
          %393 = vmatpush2.msra.mxu0 0.0
          %394 = vmatprep.subr.mxu0 0.0
          %395 = vmatpush2.msra.mxu0 0.0
          %396 = vmatprep.subr.mxu0 0.0
          %397 = vmatpush2.msra.mxu0 0.0
          %398 = vmatprep.subr.mxu0 0.0
          %399 = vmatpush2.msra.mxu0 0.0
          %400 = vmatprep.subr.mxu0 0.0
          %401 = vmatpush2.msra.mxu0 0.0
          %402 = vmatprep.subr.mxu0 0.0
          %403 = vmatpush2.msra.mxu0 0.0
          %404 = vmatprep.subr.mxu0 0.0
          %405 = vmatpush2.msra.mxu0 0.0
          %406 = vmatprep.subr.mxu0 0.0
          %407 = vmatpush2.msra.mxu0 0.0
          %408 = vmatprep.subr.mxu0 0.0
          %409 = vmatpush2.msra.mxu0 0.0
          %410 = vmatprep.subr.mxu0 0.0
          %411 = vmatpush2.msra.mxu0 0.0
          %412 = vmatprep.subr.mxu0 0.0
          %413 = vmatpush2.msra.mxu0 0.0
          %414 = vmatprep.subr.mxu0 0.0
          %415 = vmatpush2.msra.mxu0 0.0
          %416 = vmatprep.subr.mxu0 0.0
          %417 = vmatpush2.msra.mxu0 0.0
          %418 = vmatprep.subr.mxu0 0.0
          %419 = vmatpush2.msra.mxu0 0.0
          %420 = vmatprep.subr.mxu0 0.0
          %421 = vmatpush2.msra.mxu0 0.0
          %422 = vmatprep.subr.mxu0 0.0
          %423 = vmatpush2.msra.mxu0 0.0
          %424 = vmatprep.mubr.f32.mxu0 0.0
          %425 = vmatmul.mubr.f32.gmra.mxu0 %v335
          %v426 = vpop.f32.mrf.mxu0
          %v427 = vadd.f32 %v358, %v426
          %v428 = vpop.f32.mrf.mxu0
          %429 = vmatprep.mubr.f32.mxu0 0.0
          %430 = vmatmul.mubr.f32.gmra.mxu0 %v336
          %v431 = vpop.f32.mrf.mxu0
          %v432 = vadd.f32 %v358, %v431
          %v433 = vpop.f32.mrf.mxu0
          %434 = vdwg.mxu0
          %v435 = vmax.f32 %v427, 0.0
          %v436 = vmax.f32 %v432, 0.0
          %437 = vst [vmem:[#allocation2] sm:$0xff] %v435
          %438 = vst [vmem:[#allocation2 + $0x8] sm:$0xff] %v436
        $region68: #{tpu_custom_call.1} parent=47 // pred_fallthru
          _
        %p439 = scmp.gt.s32.totalorder %s27, 0
        // Predicated region
        $region69: #{tpu_custom_call.1} parent=47 // pred_check
          %p440 = pneg %p439
        $region70: #{tpu_custom_call.1} parent=47 // pred_check_branch
          %442 = sbr.rel (%p440) target = $region72
        $region71: #{tpu_custom_call.1} parent=47 // pred_region
          %s443 = ssub.s32 %s27, 1
          %p444 = scmp.gt.s32.totalorder %s443, 0
          %s445 = scalar_select %p444, %s443, 0
          %s446 = smul.u32 %s445, 128
          %s447 = scalar_lea.vmem [#allocation8], %s446
          %v448 = vld [vmem:[%s447] sm:$0xff]
          %v449 = vld [vmem:[%s447 + $0x8] sm:$0xff]
          %v450 = vld [vmem:[%s447 + $0x10] sm:$0xff]
          %v451 = vld [vmem:[%s447 + $0x18] sm:$0xff]
          %v452 = vld [vmem:[%s447 + $0x20] sm:$0xff]
          %v453 = vld [vmem:[%s447 + $0x28] sm:$0xff]
          %v454 = vld [vmem:[%s447 + $0x30] sm:$0xff]
          %v455 = vld [vmem:[%s447 + $0x38] sm:$0xff]
          %v456 = vld [vmem:[%s447 + $0x40] sm:$0xff]
          %v457 = vld [vmem:[%s447 + $0x48] sm:$0xff]
          %v458 = vld [vmem:[%s447 + $0x50] sm:$0xff]
          %v459 = vld [vmem:[%s447 + $0x58] sm:$0xff]
          %v460 = vld [vmem:[%s447 + $0x60] sm:$0xff]
          %v461 = vld [vmem:[%s447 + $0x68] sm:$0xff]
          %v462 = vld [vmem:[%s447 + $0x70] sm:$0xff]
          %v463 = vld [vmem:[%s447 + $0x78] sm:$0xff]
          %s464 = scalar_lea.vmem %s4, %s445
          %v465 = vld [vmem:[%s464] sm:$0x1]
          %v466 = vld [vmem:[#allocation2] sm:$0xff]
          %v467 = vld [vmem:[#allocation2 + $0x8] sm:$0xff]
          %v469 = vlaneseq
          %v470 = vshrl.u32 %v469, 7
          %v471 = vsub.s32 0, %v470
          %v472 = vrot.slane %v465, %v471
          %474 = vmatprep.subr.mxu0 0.0
          %475 = vmatpush1.msra.mxu0 %v463
          %476 = vmatprep.subr.mxu0 0.0
          %477 = vmatpush1.msra.mxu0 %v462
          %478 = vmatprep.subr.mxu0 0.0
          %479 = vmatpush1.msra.mxu0 %v461
          %480 = vmatprep.subr.mxu0 0.0
          %481 = vmatpush1.msra.mxu0 %v460
          %482 = vmatprep.subr.mxu0 0.0
          %483 = vmatpush1.msra.mxu0 %v459
          %484 = vmatprep.subr.mxu0 0.0
          %485 = vmatpush1.msra.mxu0 %v458
          %486 = vmatprep.subr.mxu0 0.0
          %487 = vmatpush1.msra.mxu0 %v457
          %488 = vmatprep.subr.mxu0 0.0
          %489 = vmatpush1.msra.mxu0 %v456
          %490 = vmatprep.subr.mxu0 0.0
          %491 = vmatpush1.msra.mxu0 %v455
          %492 = vmatprep.subr.mxu0 0.0
          %493 = vmatpush1.msra.mxu0 %v454
          %494 = vmatprep.subr.mxu0 0.0
          %495 = vmatpush1.msra.mxu0 %v453
          %496 = vmatprep.subr.mxu0 0.0
          %497 = vmatpush1.msra.mxu0 %v452
          %498 = vmatprep.subr.mxu0 0.0
          %499 = vmatpush1.msra.mxu0 %v451
          %500 = vmatprep.subr.mxu0 0.0
          %501 = vmatpush1.msra.mxu0 %v450
          %502 = vmatprep.subr.mxu0 0.0
          %503 = vmatpush1.msra.mxu0 %v449
          %504 = vmatprep.subr.mxu0 0.0
          %505 = vmatpush1.msra.mxu0 %v448
          %506 = vmatprep.subr.mxu0 0.0
          %507 = vmatpush2.msra.mxu0 0.0
          %508 = vmatprep.subr.mxu0 0.0
          %509 = vmatpush2.msra.mxu0 0.0
          %510 = vmatprep.subr.mxu0 0.0
          %511 = vmatpush2.msra.mxu0 0.0
          %512 = vmatprep.subr.mxu0 0.0
          %513 = vmatpush2.msra.mxu0 0.0
          %514 = vmatprep.subr.mxu0 0.0
          %515 = vmatpush2.msra.mxu0 0.0
          %516 = vmatprep.subr.mxu0 0.0
          %517 = vmatpush2.msra.mxu0 0.0
          %518 = vmatprep.subr.mxu0 0.0
          %519 = vmatpush2.msra.mxu0 0.0
          %520 = vmatprep.subr.mxu0 0.0
          %521 = vmatpush2.msra.mxu0 0.0
          %522 = vmatprep.subr.mxu0 0.0
          %523 = vmatpush2.msra.mxu0 0.0
          %524 = vmatprep.subr.mxu0 0.0
          %525 = vmatpush2.msra.mxu0 0.0
          %526 = vmatprep.subr.mxu0 0.0
          %527 = vmatpush2.msra.mxu0 0.0
          %528 = vmatprep.subr.mxu0 0.0
          %529 = vmatpush2.msra.mxu0 0.0
          %530 = vmatprep.subr.mxu0 0.0
          %531 = vmatpush2.msra.mxu0 0.0
          %532 = vmatprep.subr.mxu0 0.0
          %533 = vmatpush2.msra.mxu0 0.0
          %534 = vmatprep.subr.mxu0 0.0
          %535 = vmatpush2.msra.mxu0 0.0
          %536 = vmatprep.subr.mxu0 0.0
          %537 = vmatpush2.msra.mxu0 0.0
          %538 = vmatprep.mubr.f32.mxu0 0.0
          %539 = vmatmul.mubr.f32.gmra.mxu0 %v466
          %v540 = vpop.f32.mrf.mxu0
          %v541 = vadd.f32 %v472, %v540
          %v542 = vpop.f32.mrf.mxu0
          %543 = vmatprep.mubr.f32.mxu0 0.0
          %544 = vmatmul.mubr.f32.gmra.mxu0 %v467
          %v545 = vpop.f32.mrf.mxu0
          %v546 = vadd.f32 %v472, %v545
          %v547 = vpop.f32.mrf.mxu0
          %548 = vdwg.mxu0
          %v549 = vmax.f32 %v541, 0.0
          %v550 = vmax.f32 %v546, 0.0
          %551 = vst [vmem:[#allocation2] sm:$0xff] %v549
          %552 = vst [vmem:[#allocation2 + $0x8] sm:$0xff] %v550
        $region72: #{tpu_custom_call.1} parent=47 // pred_fallthru
          _
        %p553 = scmp.eq.s32.totalorder %s27, 2
        // Predicated region
        $region73: #{tpu_custom_call.1} parent=47 // pred_check
          %p554 = pneg %p553
        $region74: #{tpu_custom_call.1} parent=47 // pred_check_branch
          %556 = sbr.rel (%p554) target = $region76
        $region75: #{tpu_custom_call.1} parent=47 // pred_region
          %v557 = vld [vmem:[#allocation2] sm:$0xff]
          %v558 = vld [vmem:[#allocation2 + $0x8] sm:$0xff]
          %v559 = vld [vmem:[#allocation9] sm:$0xff]
          %v560 = vld [vmem:[#allocation9 + $0x8] sm:$0xff]
          %v561 = vld [vmem:[#allocation9 + $0x10] sm:$0xff]
          %v562 = vld [vmem:[#allocation9 + $0x18] sm:$0xff]
          %v563 = vld [vmem:[#allocation9 + $0x20] sm:$0xff]
          %v564 = vld [vmem:[#allocation9 + $0x28] sm:$0xff]
          %v565 = vld [vmem:[#allocation9 + $0x30] sm:$0xff]
          %v566 = vld [vmem:[#allocation9 + $0x38] sm:$0xff]
          %v567 = vld [vmem:[#allocation9 + $0x40] sm:$0xff]
          %v568 = vld [vmem:[#allocation9 + $0x48] sm:$0xff]
          %v569 = vld [vmem:[#allocation9 + $0x50] sm:$0xff]
          %v570 = vld [vmem:[#allocation9 + $0x58] sm:$0xff]
          %v571 = vld [vmem:[#allocation9 + $0x60] sm:$0xff]
          %v572 = vld [vmem:[#allocation9 + $0x68] sm:$0xff]
          %v573 = vld [vmem:[#allocation9 + $0x70] sm:$0xff]
          %v574 = vld [vmem:[#allocation9 + $0x78] sm:$0xff]
          %v575 = vld [vmem:[%s6] sm:$0x1]
          %v577 = vlaneseq
          %v578 = vshrl.u32 %v577, 7
          %v579 = vsub.s32 0, %v578
          %v580 = vrot.slane %v575, %v579
          %582 = vmatprep.subr.mxu0 0.0
          %583 = vmatpush1.msra.mxu0 %v574
          %584 = vmatprep.subr.mxu0 0.0
          %585 = vmatpush1.msra.mxu0 %v573
          %586 = vmatprep.subr.mxu0 0.0
          %587 = vmatpush1.msra.mxu0 %v572
          %588 = vmatprep.subr.mxu0 0.0
          %589 = vmatpush1.msra.mxu0 %v571
          %590 = vmatprep.subr.mxu0 0.0
          %591 = vmatpush1.msra.mxu0 %v570
          %592 = vmatprep.subr.mxu0 0.0
          %593 = vmatpush1.msra.mxu0 %v569
          %594 = vmatprep.subr.mxu0 0.0
          %595 = vmatpush1.msra.mxu0 %v568
          %596 = vmatprep.subr.mxu0 0.0
          %597 = vmatpush1.msra.mxu0 %v567
          %598 = vmatprep.subr.mxu0 0.0
          %599 = vmatpush1.msra.mxu0 %v566
          %600 = vmatprep.subr.mxu0 0.0
          %601 = vmatpush1.msra.mxu0 %v565
          %602 = vmatprep.subr.mxu0 0.0
          %603 = vmatpush1.msra.mxu0 %v564
          %604 = vmatprep.subr.mxu0 0.0
          %605 = vmatpush1.msra.mxu0 %v563
          %606 = vmatprep.subr.mxu0 0.0
          %607 = vmatpush1.msra.mxu0 %v562
          %608 = vmatprep.subr.mxu0 0.0
          %609 = vmatpush1.msra.mxu0 %v561
          %610 = vmatprep.subr.mxu0 0.0
          %611 = vmatpush1.msra.mxu0 %v560
          %612 = vmatprep.subr.mxu0 0.0
          %613 = vmatpush1.msra.mxu0 %v559
          %614 = vmatprep.subr.mxu0 0.0
          %615 = vmatpush2.msra.mxu0 0.0
          %616 = vmatprep.subr.mxu0 0.0
          %617 = vmatpush2.msra.mxu0 0.0
          %618 = vmatprep.subr.mxu0 0.0
          %619 = vmatpush2.msra.mxu0 0.0
          %620 = vmatprep.subr.mxu0 0.0
          %621 = vmatpush2.msra.mxu0 0.0
          %622 = vmatprep.subr.mxu0 0.0
          %623 = vmatpush2.msra.mxu0 0.0
          %624 = vmatprep.subr.mxu0 0.0
          %625 = vmatpush2.msra.mxu0 0.0
          %626 = vmatprep.subr.mxu0 0.0
          %627 = vmatpush2.msra.mxu0 0.0
          %628 = vmatprep.subr.mxu0 0.0
          %629 = vmatpush2.msra.mxu0 0.0
          %630 = vmatprep.subr.mxu0 0.0
          %631 = vmatpush2.msra.mxu0 0.0
          %632 = vmatprep.subr.mxu0 0.0
          %633 = vmatpush2.msra.mxu0 0.0
          %634 = vmatprep.subr.mxu0 0.0
          %635 = vmatpush2.msra.mxu0 0.0
          %636 = vmatprep.subr.mxu0 0.0
          %637 = vmatpush2.msra.mxu0 0.0
          %638 = vmatprep.subr.mxu0 0.0
          %639 = vmatpush2.msra.mxu0 0.0
          %640 = vmatprep.subr.mxu0 0.0
          %641 = vmatpush2.msra.mxu0 0.0
          %642 = vmatprep.subr.mxu0 0.0
          %643 = vmatpush2.msra.mxu0 0.0
          %644 = vmatprep.subr.mxu0 0.0
          %645 = vmatpush2.msra.mxu0 0.0
          %646 = vmatprep.mubr.f32.mxu0 0.0
          %647 = vmatmul.mubr.f32.gmra.mxu0 %v557
          %v648 = vpop.f32.mrf.mxu0
          %v649 = vadd.f32 %v580, %v648
          %v650 = vpop.f32.mrf.mxu0
          %651 = vmatprep.mubr.f32.mxu0 0.0
          %652 = vmatmul.mubr.f32.gmra.mxu0 %v558
          %v653 = vpop.f32.mrf.mxu0
          %v654 = vadd.f32 %v580, %v653
          %v655 = vpop.f32.mrf.mxu0
          %656 = vdwg.mxu0
          %657 = vst [vmem:[#allocation11] sm:$0xff] %v649
          %658 = vst [vmem:[#allocation11 + $0x8] sm:$0xff] %v654
        $region76: #{tpu_custom_call.1} parent=47 // pred_fallthru
          _
        // Predicated region
        $region77: #{tpu_custom_call.1} parent=47 // pred_check
          %p659 = pneg %p204
        $region78: #{tpu_custom_call.1} parent=47 // pred_check_branch
          %661 = sbr.rel (%p659) target = $region80
        $region79: #{tpu_custom_call.1} parent=47 // pred_region
          %s662 = smul.u32 2, %s26
          %s664 = ssub.s32 256, 256
          %665 = vsyncadd [#allocation5], %s664
          %s666 = smul.addr %s662, 128
          %s667 = scalar_lea.hbm %s7, %s666
          %s668 = sshll.u32 [#allocation11], 4
          %s669 = int_to_ptr.vmem [resolvable:$true] %s668
          %674 = dma.vmem_to_hbm [thread:$0]  %s669, 256, %s667, [#allocation5], 128, 128, 8
        $region80: #{tpu_custom_call.1} parent=47 // pred_fallthru
          _
        // Predicated region
        $region81: #{tpu_custom_call.1} parent=47 // pred_check
          %p675 = pneg %p204
        $region82: #{tpu_custom_call.1} parent=47 // pred_check_branch
          %677 = sbr.rel (%p675) target = $region84
        $region83: #{tpu_custom_call.1} parent=47 // pred_region
          %678 = dma.done [#allocation5], 256
        $region84: #{tpu_custom_call.1} parent=47 // pred_fallthru
          _
      $region48: #{tpu_custom_call.1} parent=5 // pred_fallthru
        _
      %p679 = scmp.le.s32.totalorder 2, %s17
      // Predicated region
      $region85: #{tpu_custom_call.1} parent=5 // pred_check
        %p680 = pneg %p679
      $region86: #{tpu_custom_call.1} parent=5 // pred_check_branch
        %682 = sbr.rel (%p680) target = $region88
      $region87: #{tpu_custom_call.1} parent=5 // pred_region
        %s683 = ssub.s32 %s17, 2
      $region88: #{tpu_custom_call.1} parent=5 // pred_fallthru
        _
    $region6: #{tpu_custom_call.1} parent=1 // loop_footer
      %s21 = sadd.s32 1, %s17
    $region7: #{tpu_custom_call.1} parent=1 // loop_footer_branch
      %16 = sbr.rel target = $region3
    $region8: #{tpu_custom_call.1} parent=1 // loop_exit
      _
    %684 = vsyncpa [#allocation4], 1
    %s685 = scalar_lea.sflag [#allocation4], 1
    %686 = vsyncpa %s685, 1
    %687 = vsyncpa [#allocation7], 1
    %688 = vsyncpa [#allocation10], 1
    %689 = vsyncpa [#allocation5], 1
    %s690 = scalar_lea.sflag [#allocation5], 1
    %691 = vsyncpa %s690, 1

// kernel: tpu_custom_call.1
$region0: #{tpu_custom_call.1}
  #allocation0 [shape = 'u32[]', space=smem, size = 0x4, offset = 0x4, fixed_abs, tag = 'smem constant byte address 0x4 - core index']
  #allocation1 [shape = 'u32[144,128]{1,0:T(1,128)}', space=vmem, size = 0x12000, scoped, tag = 'internal scratch']
  #allocation2 [shape = 'f32[16,128]{1,0:T(8,128)}', space=vmem, size = 0x2000, scoped, tag = 'scratch operand']
  %s0 = inlined_call_operand.hbm [shape: f32[16,128], index: 0, kind: input, shape index: {}]
  %s1 = inlined_call_operand.hbm [shape: f32[128,128], index: 1, kind: input, shape index: {}]
  %s2 = inlined_call_operand.vmem [shape: f32[1,128], index: 2, kind: input, shape index: {}]
  %s3 = inlined_call_operand.hbm [shape: f32[2,128,128], index: 3, kind: input, shape index: {}]
  %s4 = inlined_call_operand.vmem [shape: f32[2,1,128], index: 4, kind: input, shape index: {}]
  %s5 = inlined_call_operand.hbm [shape: f32[128,128], index: 5, kind: input, shape index: {}]
  %s6 = inlined_call_operand.vmem [shape: f32[1,128], index: 6, kind: input, shape index: {}]
  %s7 = inlined_call_operand.hbm [shape: f32[16,128], index: 7, kind: output, shape index: {}]
  %s8 = sld [smem:[#allocation0]]
  $region89: #{tpu_custom_call.1} parent=0
    _
  %s10 = ssub.s32 1, %s8
  %s11 = scalar_select 0, %s10, %s8
  $region1: #{tpu_custom_call.1} parent=0
    #allocation3 [shape = 'u8[8192]{0}', space=vmem, size = 0x2000, scoped, tag = 'input window, operand 0, single buffered']
    #allocation4 [shape = 's32[2]{0}', space=sflag, size = 0x8, scoped, tag = 'scoped memory for tpu_custom_call.1']
    #allocation5 [shape = 's32[2]{0}', space=sflag, size = 0x8, scoped, tag = 'scoped memory for tpu_custom_call.1']
    #allocation6 [shape = 'u8[65536]{0}', space=vmem, size = 0x10000, scoped, tag = 'input window, operand 1, single buffered']
    #allocation7 [shape = 's32[1]{0}', space=sflag, size = 0x4, scoped, tag = 'scoped memory for tpu_custom_call.1']
    #allocation8 [shape = 'u8[131072]{0}', space=vmem, size = 0x20000, scoped, tag = 'input window, operand 3, single buffered']
    #allocation9 [shape = 'u8[65536]{0}', space=vmem, size = 0x10000, scoped, tag = 'input window, operand 5, single buffered']
    #allocation10 [shape = 's32[1]{0}', space=sflag, size = 0x4, scoped, tag = 'scoped memory for tpu_custom_call.1']
    #allocation11 [shape = 'u8[8192]{0}', space=vmem, size = 0x2000, scoped, tag = 'output window, operand 0, single buffered']
    %12 = vsyncpa [#allocation4], 0
    %13 = vsyncpa [#allocation7], 0
    %14 = vsyncpa [#allocation10], 0
    %15 = vsyncpa [#allocation5], 0
    loop: start=0, step=1, limit=5
    $region2: #{tpu_custom_call.1} parent=1 // loop_pre_header
      _
    $region3: #{tpu_custom_call.1} parent=1 // loop_header
      %s17 = sphi 0, %s21
      %p18 = scmp.ge.s32.totalorder %s17, 5
      %s24 = sphi 0, %s36
      %s25 = sphi 0, %s32
      %s26 = sphi 0, %s24
      %s27 = sphi 0, %s25
      %s28 = sphi 0, %s26
      %s29 = sphi 0, %s27
      %s39 = sphi 0, %s41
      %s42 = sphi 0, %s39
      %s43 = sphi 0, %s42
      %s59 = sphi 0, %s43
      %s63 = sphi 0, %s63
      %s65 = sphi 0, %s63
      %s66 = sphi 0, %s65
      %s80 = sphi 0, %s66
      %s84 = sphi 0, %s84
      %s86 = sphi 0, %s84
      %s87 = sphi 0, %s86
      %s101 = sphi 0, %s87
      %s105 = sphi 0, %s105
      %s107 = sphi 0, %s105
      %s108 = sphi 0, %s107
      %s122 = sphi 0, %s108
      %s126 = sphi 0, %s126
      %s128 = sphi 0, %s126
      %s129 = sphi 0, %s128
      %s143 = sphi 0, %s129
      %s147 = sphi 0, %s147
      %s149 = sphi 0, %s147
      %s150 = sphi 0, %s149
      %s164 = sphi 0, %s150
      %s168 = sphi 0, %s168
      %s170 = sphi 0, %s168
      %s171 = sphi 0, %s170
      %s185 = sphi 0, %s171
      %s191 = sphi 0, %s193
      %s194 = sphi 0, %s191
      %s195 = sphi 0, %s194
      %s211 = sphi 0, %s195
    $region4: #{tpu_custom_call.1} parent=1 // loop_header_branch
      %20 = sbr.rel (%p18) target = $region8
    $region5: #{tpu_custom_call.1} parent=1 // loop_body
      %s22 = ssub.s32 %s17, 1
      %s23 = ssub.s32 %s17, 2
      %s30 = sadd.s32 1, %s25
      %p31 = scmp.ge.s32.totalorder %s30, 3
      %s32 = scalar_select %p31, 0, %s30
      %s33 = sadd.s32 1, %s24
      %s34 = scalar_select %p31, %s33, %s24
      %p35 = scmp.ge.s32.totalorder %s34, 1
      %s36 = scalar_select %p35, 0, %s34
      %s37 = ssub.s32 %s24, %s36
      %p38 = scmp.eq.s32.totalorder %s37, 0
      %s40 = sadd.s32 %s39, 1
      %s41 = scalar_select %p38, %s39, %s40
      %p44 = pneg %p38
      %p45 = scmp.eq.s32.totalorder %s17, 2
      %p46 = por %p44, %p45
      %p47 = scmp.ne.s32.totalorder %s39, %s42
      %p48 = scmp.eq.s32.totalorder %s17, 0
      %p49 = por %p47, %p48
      %p50 = scmp.ne.s32.totalorder %s39, %s42
      %p51 = scmp.eq.s32.totalorder %s22, 2
      %p52 = por %p50, %p51
      %p53 = scmp.ne.s32.totalorder %s42, %s43
      %p54 = scmp.eq.s32.totalorder %s22, 0
      %p55 = por %p53, %p54
      %p56 = scmp.ne.s32.totalorder %s42, %s43
      %p57 = scmp.eq.s32.totalorder %s23, 2
      %p58 = por %p56, %p57
      %p60 = scmp.ne.s32.totalorder %s43, %s59
      %p61 = scmp.eq.s32.totalorder %s23, 0
      %p62 = por %p60, %p61
      %s64 = sadd.s32 %s63, 1
      %p67 = scmp.eq.s32.totalorder %s17, 2
      %p68 = scmp.ne.s32.totalorder %s63, %s65
      %p69 = scmp.eq.s32.totalorder %s17, 0
      %p70 = por %p68, %p69
      %p71 = scmp.ne.s32.totalorder %s63, %s65
      %p72 = scmp.eq.s32.totalorder %s22, 2
      %p73 = por %p71, %p72
      %p74 = scmp.ne.s32.totalorder %s65, %s66
      %p75 = scmp.eq.s32.totalorder %s22, 0
      %p76 = por %p74, %p75
      %p77 = scmp.ne.s32.totalorder %s65, %s66
      %p78 = scmp.eq.s32.totalorder %s23, 2
      %p79 = por %p77, %p78
      %p81 = scmp.ne.s32.totalorder %s66, %s80
      %p82 = scmp.eq.s32.totalorder %s23, 0
      %p83 = por %p81, %p82
      %s85 = sadd.s32 %s84, 1
      %p88 = scmp.eq.s32.totalorder %s17, 2
      %p89 = scmp.ne.s32.totalorder %s84, %s86
      %p90 = scmp.eq.s32.totalorder %s17, 0
      %p91 = por %p89, %p90
      %p92 = scmp.ne.s32.totalorder %s84, %s86
      %p93 = scmp.eq.s32.totalorder %s22, 2
      %p94 = por %p92, %p93
      %p95 = scmp.ne.s32.totalorder %s86, %s87
      %p96 = scmp.eq.s32.totalorder %s22, 0
      %p97 = por %p95, %p96
      %p98 = scmp.ne.s32.totalorder %s86, %s87
      %p99 = scmp.eq.s32.totalorder %s23, 2
      %p100 = por %p98, %p99
      %p102 = scmp.ne.s32.totalorder %s87, %s101
      %p103 = scmp.eq.s32.totalorder %s23, 0
      %p104 = por %p102, %p103
      %s106 = sadd.s32 %s105, 1
      %p109 = scmp.eq.s32.totalorder %s17, 2
      %p110 = scmp.ne.s32.totalorder %s105, %s107
      %p111 = scmp.eq.s32.totalorder %s17, 0
      %p112 = por %p110, %p111
      %p113 = scmp.ne.s32.totalorder %s105, %s107
      %p114 = scmp.eq.s32.totalorder %s22, 2
      %p115 = por %p113, %p114
      %p116 = scmp.ne.s32.totalorder %s107, %s108
      %p117 = scmp.eq.s32.totalorder %s22, 0
      %p118 = por %p116, %p117
      %p119 = scmp.ne.s32.totalorder %s107, %s108
      %p120 = scmp.eq.s32.totalorder %s23, 2
      %p121 = por %p119, %p120
      %p123 = scmp.ne.s32.totalorder %s108, %s122
      %p124 = scmp.eq.s32.totalorder %s23, 0
      %p125 = por %p123, %p124
      %s127 = sadd.s32 %s126, 1
      %p130 = scmp.eq.s32.totalorder %s17, 2
      %p131 = scmp.ne.s32.totalorder %s126, %s128
      %p132 = scmp.eq.s32.totalorder %s17, 0
      %p133 = por %p131, %p132
      %p134 = scmp.ne.s32.totalorder %s126, %s128
      %p135 = scmp.eq.s32.totalorder %s22, 2
      %p136 = por %p134, %p135
      %p137 = scmp.ne.s32.totalorder %s128, %s129
      %p138 = scmp.eq.s32.totalorder %s22, 0
      %p139 = por %p137, %p138
      %p140 = scmp.ne.s32.totalorder %s128, %s129
      %p141 = scmp.eq.s32.totalorder %s23, 2
      %p142 = por %p140, %p141
      %p144 = scmp.ne.s32.totalorder %s129, %s143
      %p145 = scmp.eq.s32.totalorder %s23, 0
      %p146 = por %p144, %p145
      %s148 = sadd.s32 %s147, 1
      %p151 = scmp.eq.s32.totalorder %s17, 2
      %p152 = scmp.ne.s32.totalorder %s147, %s149
      %p153 = scmp.eq.s32.totalorder %s17, 0
      %p154 = por %p152, %p153
      %p155 = scmp.ne.s32.totalorder %s147, %s149
      %p156 = scmp.eq.s32.totalorder %s22, 2
      %p157 = por %p155, %p156
      %p158 = scmp.ne.s32.totalorder %s149, %s150
      %p159 = scmp.eq.s32.totalorder %s22, 0
      %p160 = por %p158, %p159
      %p161 = scmp.ne.s32.totalorder %s149, %s150
      %p162 = scmp.eq.s32.totalorder %s23, 2
      %p163 = por %p161, %p162
      %p165 = scmp.ne.s32.totalorder %s150, %s164
      %p166 = scmp.eq.s32.totalorder %s23, 0
      %p167 = por %p165, %p166
      %s169 = sadd.s32 %s168, 1
      %p172 = scmp.eq.s32.totalorder %s17, 2
      %p173 = scmp.ne.s32.totalorder %s168, %s170
      %p174 = scmp.eq.s32.totalorder %s17, 0
      %p175 = por %p173, %p174
      %p176 = scmp.ne.s32.totalorder %s168, %s170
      %p177 = scmp.eq.s32.totalorder %s22, 2
      %p178 = por %p176, %p177
      %p179 = scmp.ne.s32.totalorder %s170, %s171
      %p180 = scmp.eq.s32.totalorder %s22, 0
      %p181 = por %p179, %p180
      %p182 = scmp.ne.s32.totalorder %s170, %s171
      %p183 = scmp.eq.s32.totalorder %s23, 2
      %p184 = por %p182, %p183
      %p186 = scmp.ne.s32.totalorder %s171, %s185
      %p187 = scmp.eq.s32.totalorder %s23, 0
      %p188 = por %p186, %p187
      %s189 = ssub.s32 %s24, %s36
      %p190 = scmp.eq.s32.totalorder %s189, 0
      %s192 = sadd.s32 %s191, 1
      %s193 = scalar_select %p190, %s191, %s192
      %p196 = pneg %p190
      %p197 = scmp.eq.s32.totalorder %s17, 2
      %p198 = por %p196, %p197
      %p199 = scmp.ne.s32.totalorder %s191, %s194
      %p200 = scmp.eq.s32.totalorder %s17, 0
      %p201 = por %p199, %p200
      %p202 = scmp.ne.s32.totalorder %s191, %s194
      %p203 = scmp.eq.s32.totalorder %s22, 2
      %p204 = por %p202, %p203
      %p205 = scmp.ne.s32.totalorder %s194, %s195
      %p206 = scmp.eq.s32.totalorder %s22, 0
      %p207 = por %p205, %p206
      %p208 = scmp.ne.s32.totalorder %s194, %s195
      %p209 = scmp.eq.s32.totalorder %s23, 2
      %p210 = por %p208, %p209
      %p212 = scmp.ne.s32.totalorder %s195, %s211
      %p213 = scmp.eq.s32.totalorder %s23, 0
      %p214 = por %p212, %p213
      %p215 = scmp.le.s32.totalorder 1, %s17
      %p216 = scmp.lt.s32.totalorder %s17, 4
      %p217 = pnand %p215, %p216
      %p218 = pneg %p217
      // Predicated region
      $region9: #{tpu_custom_call.1} parent=5 // pred_check
        _
      $region10: #{tpu_custom_call.1} parent=5 // pred_check_branch
        %220 = sbr.rel (%p217) target = $region12
      $region11: #{tpu_custom_call.1} parent=5 // pred_region
        %s221 = ssub.s32 %s17, 1
        // Predicated region
        $region13: #{tpu_custom_call.1} parent=11 // pred_check
          %p222 = pneg %p55
        $region14: #{tpu_custom_call.1} parent=11 // pred_check_branch
          %224 = sbr.rel (%p222) target = $region16
        $region15: #{tpu_custom_call.1} parent=11 // pred_region
          %s225 = smul.u32 2, %s26
          %s227 = ssub.s32 256, 256
          %228 = vsyncadd [#allocation4], %s227
          %s229 = smul.addr %s225, 128
          %s230 = scalar_lea.hbm %s0, %s229
          %s231 = sshll.u32 [#allocation3], 4
          %s232 = int_to_ptr.vmem [resolvable:$true] %s231
          %237 = dma.hbm_to_vmem [thread:$0]  %s230, 256, %s232, [#allocation4], 128, 128, 8
        $region16: #{tpu_custom_call.1} parent=11 // pred_fallthru
          _
        // Predicated region
        $region17: #{tpu_custom_call.1} parent=11 // pred_check
          %p238 = pneg %p76
        $region18: #{tpu_custom_call.1} parent=11 // pred_check_branch
          %240 = sbr.rel (%p238) target = $region20
        $region19: #{tpu_custom_call.1} parent=11 // pred_region
          %s242 = ssub.s32 2048, 2048
          %243 = vsyncadd [#allocation7], %s242
          %s244 = sshll.u32 [#allocation6], 4
          %s245 = int_to_ptr.vmem [resolvable:$true] %s244
          %250 = dma.hbm_to_vmem [thread:$0]  %s1, 2048, %s245, [#allocation7], 128, 128, 8
        $region20: #{tpu_custom_call.1} parent=11 // pred_fallthru
          _
        // Predicated region
        $region21: #{tpu_custom_call.1} parent=11 // pred_check
          %p251 = pneg %p97
        $region22: #{tpu_custom_call.1} parent=11 // pred_check_branch
          %253 = sbr.rel (%p251) target = $region24
        $region23: #{tpu_custom_call.1} parent=11 // pred_region
          _
        $region24: #{tpu_custom_call.1} parent=11 // pred_fallthru
          _
        // Predicated region
        $region25: #{tpu_custom_call.1} parent=11 // pred_check
          %p254 = pneg %p118
        $region26: #{tpu_custom_call.1} parent=11 // pred_check_branch
          %256 = sbr.rel (%p254) target = $region28
        $region27: #{tpu_custom_call.1} parent=11 // pred_region
          %s258 = ssub.s32 4096, 4096
          %259 = vsyncadd [#allocation7], %s258
          %s260 = sshll.u32 [#allocation8], 4
          %s261 = int_to_ptr.vmem [resolvable:$true] %s260
          %266 = dma.hbm_to_vmem [thread:$0]  %s3, 4096, %s261, [#allocation7], 128, 128, 8
        $region28: #{tpu_custom_call.1} parent=11 // pred_fallthru
          _
        // Predicated region
        $region29: #{tpu_custom_call.1} parent=11 // pred_check
          %p267 = pneg %p139
        $region30: #{tpu_custom_call.1} parent=11 // pred_check_branch
          %269 = sbr.rel (%p267) target = $region32
        $region31: #{tpu_custom_call.1} parent=11 // pred_region
          _
        $region32: #{tpu_custom_call.1} parent=11 // pred_fallthru
          _
        // Predicated region
        $region33: #{tpu_custom_call.1} parent=11 // pred_check
          %p270 = pneg %p160
        $region34: #{tpu_custom_call.1} parent=11 // pred_check_branch
          %272 = sbr.rel (%p270) target = $region36
        $region35: #{tpu_custom_call.1} parent=11 // pred_region
          %s274 = ssub.s32 2048, 2048
          %275 = vsyncadd [#allocation10], %s274
          %s276 = sshll.u32 [#allocation9], 4
          %s277 = int_to_ptr.vmem [resolvable:$true] %s276
          %282 = dma.hbm_to_vmem [thread:$0]  %s5, 2048, %s277, [#allocation10], 128, 128, 8
        $region36: #{tpu_custom_call.1} parent=11 // pred_fallthru
          _
        // Predicated region
        $region37: #{tpu_custom_call.1} parent=11 // pred_check
          %p283 = pneg %p181
        $region38: #{tpu_custom_call.1} parent=11 // pred_check_branch
          %285 = sbr.rel (%p283) target = $region40
        $region39: #{tpu_custom_call.1} parent=11 // pred_region
          _
        $region40: #{tpu_custom_call.1} parent=11 // pred_fallthru
          _
      $region12: #{tpu_custom_call.1} parent=5 // pred_fallthru
        _
      %p286 = scmp.lt.s32.totalorder %s17, 3
      // Predicated region
      $region41: #{tpu_custom_call.1} parent=5 // pred_check
        %p287 = pneg %p286
      $region42: #{tpu_custom_call.1} parent=5 // pred_check_branch
        %289 = sbr.rel (%p287) target = $region44
      $region43: #{tpu_custom_call.1} parent=5 // pred_region
        _
      $region44: #{tpu_custom_call.1} parent=5 // pred_fallthru
        _
      %p290 = scmp.le.s32.totalorder 1, %s17
      %p291 = scmp.lt.s32.totalorder %s17, 4
      %p292 = pnand %p290, %p291
      %p293 = pneg %p292
      // Predicated region
      $region45: #{tpu_custom_call.1} parent=5 // pred_check
        _
      $region46: #{tpu_custom_call.1} parent=5 // pred_check_branch
        %295 = sbr.rel (%p292) target = $region48
      $region47: #{tpu_custom_call.1} parent=5 // pred_region
        %s296 = ssub.s32 %s17, 1
        // Predicated region
        $region49: #{tpu_custom_call.1} parent=47 // pred_check
          %p297 = pneg %p55
        $region50: #{tpu_custom_call.1} parent=47 // pred_check_branch
          %299 = sbr.rel (%p297) target = $region52
        $region51: #{tpu_custom_call.1} parent=47 // pred_region
          %300 = dma.done [#allocation4], 256
        $region52: #{tpu_custom_call.1} parent=47 // pred_fallthru
          _
        // Predicated region
        $region53: #{tpu_custom_call.1} parent=47 // pred_check
          %p301 = pneg %p76
        $region54: #{tpu_custom_call.1} parent=47 // pred_check_branch
          %303 = sbr.rel (%p301) target = $region56
        $region55: #{tpu_custom_call.1} parent=47 // pred_region
          %304 = dma.done [#allocation7], 2048
        $region56: #{tpu_custom_call.1} parent=47 // pred_fallthru
          _
        // Predicated region
        $region57: #{tpu_custom_call.1} parent=47 // pred_check
          %p305 = pneg %p118
        $region58: #{tpu_custom_call.1} parent=47 // pred_check_branch
          %307 = sbr.rel (%p305) target = $region60
        $region59: #{tpu_custom_call.1} parent=47 // pred_region
          %308 = dma.done [#allocation7], 4096
        $region60: #{tpu_custom_call.1} parent=47 // pred_fallthru
          _
        // Predicated region
        $region61: #{tpu_custom_call.1} parent=47 // pred_check
          %p309 = pneg %p160
        $region62: #{tpu_custom_call.1} parent=47 // pred_check_branch
          %311 = sbr.rel (%p309) target = $region64
        $region63: #{tpu_custom_call.1} parent=47 // pred_region
          %312 = dma.done [#allocation10], 2048
        $region64: #{tpu_custom_call.1} parent=47 // pred_fallthru
          _
        %p313 = pneg %p55
        %p314 = pneg %p52
        %p315 = pneg %p76
        %p316 = pneg %p73
        %p317 = pneg %p97
        %p318 = pneg %p94
        %p319 = pneg %p118
        %p320 = pneg %p115
        %p321 = pneg %p139
        %p322 = pneg %p136
        %p323 = pneg %p160
        %p324 = pneg %p157
        %p325 = pneg %p181
        %p326 = pneg %p178
        %p327 = pneg %p207
        %p328 = pneg %p204
        %s329 = smul.u32 2, %s26
        %s330 = smul.u32 2, %s26
        %p331 = scmp.eq.s32.totalorder %s27, 0
        // Predicated region
        $region65: #{tpu_custom_call.1} parent=47 // pred_check
          %p332 = pneg %p331
        $region66: #{tpu_custom_call.1} parent=47 // pred_check_branch
          %334 = sbr.rel (%p332) target = $region68
        $region67: #{tpu_custom_call.1} parent=47 // pred_region
          %v335 = vld [vmem:[#allocation3] sm:$0xff]
          %v336 = vld [vmem:[#allocation3 + $0x8] sm:$0xff]
          %v337 = vld [vmem:[#allocation6] sm:$0xff]
          %v338 = vld [vmem:[#allocation6 + $0x8] sm:$0xff]
          %v339 = vld [vmem:[#allocation6 + $0x10] sm:$0xff]
          %v340 = vld [vmem:[#allocation6 + $0x18] sm:$0xff]
          %v341 = vld [vmem:[#allocation6 + $0x20] sm:$0xff]
          %v342 = vld [vmem:[#allocation6 + $0x28] sm:$0xff]
          %v343 = vld [vmem:[#allocation6 + $0x30] sm:$0xff]
          %v344 = vld [vmem:[#allocation6 + $0x38] sm:$0xff]
          %v345 = vld [vmem:[#allocation6 + $0x40] sm:$0xff]
          %v346 = vld [vmem:[#allocation6 + $0x48] sm:$0xff]
          %v347 = vld [vmem:[#allocation6 + $0x50] sm:$0xff]
          %v348 = vld [vmem:[#allocation6 + $0x58] sm:$0xff]
          %v349 = vld [vmem:[#allocation6 + $0x60] sm:$0xff]
          %v350 = vld [vmem:[#allocation6 + $0x68] sm:$0xff]
          %v351 = vld [vmem:[#allocation6 + $0x70] sm:$0xff]
          %v352 = vld [vmem:[#allocation6 + $0x78] sm:$0xff]
          %v353 = vld [vmem:[%s2] sm:$0x1]
          %v355 = vlaneseq
          %v356 = vshrl.u32 %v355, 7
          %v357 = vsub.s32 0, %v356
          %v358 = vrot.slane %v353, %v357
          %360 = vmatprep.subr.mxu0 0.0
          %361 = vmatpush1.msra.mxu0 %v352
          %362 = vmatprep.subr.mxu0 0.0
          %363 = vmatpush1.msra.mxu0 %v351
          %364 = vmatprep.subr.mxu0 0.0
          %365 = vmatpush1.msra.mxu0 %v350
          %366 = vmatprep.subr.mxu0 0.0
          %367 = vmatpush1.msra.mxu0 %v349
          %368 = vmatprep.subr.mxu0 0.0
          %369 = vmatpush1.msra.mxu0 %v348
          %370 = vmatprep.subr.mxu0 0.0
          %371 = vmatpush1.msra.mxu0 %v347
          %372 = vmatprep.subr.mxu0 0.0
          %373 = vmatpush1.msra.mxu0 %v346
          %374 = vmatprep.subr.mxu0 0.0
          %375 = vmatpush1.msra.mxu0 %v345
          %376 = vmatprep.subr.mxu0 0.0
          %377 = vmatpush1.msra.mxu0 %v344
          %378 = vmatprep.subr.mxu0 0.0
          %379 = vmatpush1.msra.mxu0 %v343
          %380 = vmatprep.subr.mxu0 0.0
          %381 = vmatpush1.msra.mxu0 %v342
          %382 = vmatprep.subr.mxu0 0.0
          %383 = vmatpush1.msra.mxu0 %v341
          %384 = vmatprep.subr.mxu0 0.0
          %385 = vmatpush1.msra.mxu0 %v340
          %386 = vmatprep.subr.mxu0 0.0
          %387 = vmatpush1.msra.mxu0 %v339
          %388 = vmatprep.subr.mxu0 0.0
          %389 = vmatpush1.msra.mxu0 %v338
          %390 = vmatprep.subr.mxu0 0.0
          %391 = vmatpush1.msra.mxu0 %v337
          %392 = vmatprep.subr.mxu0 0.0
          %393 = vmatpush2.msra.mxu0 0.0
          %394 = vmatprep.subr.mxu0 0.0
          %395 = vmatpush2.msra.mxu0 0.0
          %396 = vmatprep.subr.mxu0 0.0
          %397 = vmatpush2.msra.mxu0 0.0
          %398 = vmatprep.subr.mxu0 0.0
          %399 = vmatpush2.msra.mxu0 0.0
          %400 = vmatprep.subr.mxu0 0.0
          %401 = vmatpush2.msra.mxu0 0.0
          %402 = vmatprep.subr.mxu0 0.0
          %403 = vmatpush2.msra.mxu0 0.0
          %404 = vmatprep.subr.mxu0 0.0
          %405 = vmatpush2.msra.mxu0 0.0
          %406 = vmatprep.subr.mxu0 0.0
          %407 = vmatpush2.msra.mxu0 0.0
          %408 = vmatprep.subr.mxu0 0.0
          %409 = vmatpush2.msra.mxu0 0.0
          %410 = vmatprep.subr.mxu0 0.0
          %411 = vmatpush2.msra.mxu0 0.0
          %412 = vmatprep.subr.mxu0 0.0
          %413 = vmatpush2.msra.mxu0 0.0
          %414 = vmatprep.subr.mxu0 0.0
          %415 = vmatpush2.msra.mxu0 0.0
          %416 = vmatprep.subr.mxu0 0.0
          %417 = vmatpush2.msra.mxu0 0.0
          %418 = vmatprep.subr.mxu0 0.0
          %419 = vmatpush2.msra.mxu0 0.0
          %420 = vmatprep.subr.mxu0 0.0
          %421 = vmatpush2.msra.mxu0 0.0
          %422 = vmatprep.subr.mxu0 0.0
          %423 = vmatpush2.msra.mxu0 0.0
          %424 = vmatprep.mubr.f32.mxu0 0.0
          %425 = vmatmul.mubr.f32.gmra.mxu0 %v335
          %v426 = vpop.f32.mrf.mxu0
          %v427 = vadd.f32 %v358, %v426
          %v428 = vpop.f32.mrf.mxu0
          %429 = vmatprep.mubr.f32.mxu0 0.0
          %430 = vmatmul.mubr.f32.gmra.mxu0 %v336
          %v431 = vpop.f32.mrf.mxu0
          %v432 = vadd.f32 %v358, %v431
          %v433 = vpop.f32.mrf.mxu0
          %434 = vdwg.mxu0
          %v435 = vmax.f32 %v427, 0.0
          %v436 = vmax.f32 %v432, 0.0
          %437 = vst [vmem:[#allocation2] sm:$0xff] %v435
          %438 = vst [vmem:[#allocation2 + $0x8] sm:$0xff] %v436
        $region68: #{tpu_custom_call.1} parent=47 // pred_fallthru
          _
        %p439 = scmp.gt.s32.totalorder %s27, 0
        // Predicated region
        $region69: #{tpu_custom_call.1} parent=47 // pred_check
          %p440 = pneg %p439
        $region70: #{tpu_custom_call.1} parent=47 // pred_check_branch
          %442 = sbr.rel (%p440) target = $region72
        $region71: #{tpu_custom_call.1} parent=47 // pred_region
          %s443 = ssub.s32 %s27, 1
          %p444 = scmp.gt.s32.totalorder %s443, 0
          %s445 = scalar_select %p444, %s443, 0
          %s446 = smul.u32 %s445, 128
          %s447 = scalar_lea.vmem [#allocation8], %s446
          %v448 = vld [vmem:[%s447] sm:$0xff]
          %v449 = vld [vmem:[%s447 + $0x8] sm:$0xff]
          %v450 = vld [vmem:[%s447 + $0x10] sm:$0xff]
          %v451 = vld [vmem:[%s447 + $0x18] sm:$0xff]
          %v452 = vld [vmem:[%s447 + $0x20] sm:$0xff]
          %v453 = vld [vmem:[%s447 + $0x28] sm:$0xff]
          %v454 = vld [vmem:[%s447 + $0x30] sm:$0xff]
          %v455 = vld [vmem:[%s447 + $0x38] sm:$0xff]
          %v456 = vld [vmem:[%s447 + $0x40] sm:$0xff]
          %v457 = vld [vmem:[%s447 + $0x48] sm:$0xff]
          %v458 = vld [vmem:[%s447 + $0x50] sm:$0xff]
          %v459 = vld [vmem:[%s447 + $0x58] sm:$0xff]
          %v460 = vld [vmem:[%s447 + $0x60] sm:$0xff]
          %v461 = vld [vmem:[%s447 + $0x68] sm:$0xff]
          %v462 = vld [vmem:[%s447 + $0x70] sm:$0xff]
          %v463 = vld [vmem:[%s447 + $0x78] sm:$0xff]
          %s464 = scalar_lea.vmem %s4, %s445
          %v465 = vld [vmem:[%s464] sm:$0x1]
          %v466 = vld [vmem:[#allocation2] sm:$0xff]
          %v467 = vld [vmem:[#allocation2 + $0x8] sm:$0xff]
          %v469 = vlaneseq
          %v470 = vshrl.u32 %v469, 7
          %v471 = vsub.s32 0, %v470
          %v472 = vrot.slane %v465, %v471
          %474 = vmatprep.subr.mxu0 0.0
          %475 = vmatpush1.msra.mxu0 %v463
          %476 = vmatprep.subr.mxu0 0.0
          %477 = vmatpush1.msra.mxu0 %v462
          %478 = vmatprep.subr.mxu0 0.0
          %479 = vmatpush1.msra.mxu0 %v461
          %480 = vmatprep.subr.mxu0 0.0
          %481 = vmatpush1.msra.mxu0 %v460
          %482 = vmatprep.subr.mxu0 0.0
          %483 = vmatpush1.msra.mxu0 %v459
          %484 = vmatprep.subr.mxu0 0.0
          %485 = vmatpush1.msra.mxu0 %v458
          %486 = vmatprep.subr.mxu0 0.0
          %487 = vmatpush1.msra.mxu0 %v457
          %488 = vmatprep.subr.mxu0 0.0
          %489 = vmatpush1.msra.mxu0 %v456
          %490 = vmatprep.subr.mxu0 0.0
          %491 = vmatpush1.msra.mxu0 %v455
          %492 = vmatprep.subr.mxu0 0.0
          %493 = vmatpush1.msra.mxu0 %v454
          %494 = vmatprep.subr.mxu0 0.0
          %495 = vmatpush1.msra.mxu0 %v453
          %496 = vmatprep.subr.mxu0 0.0
          %497 = vmatpush1.msra.mxu0 %v452
          %498 = vmatprep.subr.mxu0 0.0
          %499 = vmatpush1.msra.mxu0 %v451
          %500 = vmatprep.subr.mxu0 0.0
          %501 = vmatpush1.msra.mxu0 %v450
          %502 = vmatprep.subr.mxu0 0.0
          %503 = vmatpush1.msra.mxu0 %v449
          %504 = vmatprep.subr.mxu0 0.0
          %505 = vmatpush1.msra.mxu0 %v448
          %506 = vmatprep.subr.mxu0 0.0
          %507 = vmatpush2.msra.mxu0 0.0
          %508 = vmatprep.subr.mxu0 0.0
          %509 = vmatpush2.msra.mxu0 0.0
          %510 = vmatprep.subr.mxu0 0.0
          %511 = vmatpush2.msra.mxu0 0.0
          %512 = vmatprep.subr.mxu0 0.0
          %513 = vmatpush2.msra.mxu0 0.0
          %514 = vmatprep.subr.mxu0 0.0
          %515 = vmatpush2.msra.mxu0 0.0
          %516 = vmatprep.subr.mxu0 0.0
          %517 = vmatpush2.msra.mxu0 0.0
          %518 = vmatprep.subr.mxu0 0.0
          %519 = vmatpush2.msra.mxu0 0.0
          %520 = vmatprep.subr.mxu0 0.0
          %521 = vmatpush2.msra.mxu0 0.0
          %522 = vmatprep.subr.mxu0 0.0
          %523 = vmatpush2.msra.mxu0 0.0
          %524 = vmatprep.subr.mxu0 0.0
          %525 = vmatpush2.msra.mxu0 0.0
          %526 = vmatprep.subr.mxu0 0.0
          %527 = vmatpush2.msra.mxu0 0.0
          %528 = vmatprep.subr.mxu0 0.0
          %529 = vmatpush2.msra.mxu0 0.0
          %530 = vmatprep.subr.mxu0 0.0
          %531 = vmatpush2.msra.mxu0 0.0
          %532 = vmatprep.subr.mxu0 0.0
          %533 = vmatpush2.msra.mxu0 0.0
          %534 = vmatprep.subr.mxu0 0.0
          %535 = vmatpush2.msra.mxu0 0.0
          %536 = vmatprep.subr.mxu0 0.0
          %537 = vmatpush2.msra.mxu0 0.0
          %538 = vmatprep.mubr.f32.mxu0 0.0
          %539 = vmatmul.mubr.f32.gmra.mxu0 %v466
          %v540 = vpop.f32.mrf.mxu0
          %v541 = vadd.f32 %v472, %v540
          %v542 = vpop.f32.mrf.mxu0
          %543 = vmatprep.mubr.f32.mxu0 0.0
          %544 = vmatmul.mubr.f32.gmra.mxu0 %v467
          %v545 = vpop.f32.mrf.mxu0
          %v546 = vadd.f32 %v472, %v545
          %v547 = vpop.f32.mrf.mxu0
          %548 = vdwg.mxu0
          %v549 = vmax.f32 %v541, 0.0
          %v550 = vmax.f32 %v546, 0.0
          %551 = vst [vmem:[#allocation2] sm:$0xff] %v549
          %552 = vst [vmem:[#allocation2 + $0x8] sm:$0xff] %v550
        $region72: #{tpu_custom_call.1} parent=47 // pred_fallthru
          _
        %p553 = scmp.eq.s32.totalorder %s27, 2
        // Predicated region
        $region73: #{tpu_custom_call.1} parent=47 // pred_check
          %p554 = pneg %p553
        $region74: #{tpu_custom_call.1} parent=47 // pred_check_branch
          %556 = sbr.rel (%p554) target = $region76
        $region75: #{tpu_custom_call.1} parent=47 // pred_region
          %v557 = vld [vmem:[#allocation2] sm:$0xff]
          %v558 = vld [vmem:[#allocation2 + $0x8] sm:$0xff]
          %v559 = vld [vmem:[#allocation9] sm:$0xff]
          %v560 = vld [vmem:[#allocation9 + $0x8] sm:$0xff]
          %v561 = vld [vmem:[#allocation9 + $0x10] sm:$0xff]
          %v562 = vld [vmem:[#allocation9 + $0x18] sm:$0xff]
          %v563 = vld [vmem:[#allocation9 + $0x20] sm:$0xff]
          %v564 = vld [vmem:[#allocation9 + $0x28] sm:$0xff]
          %v565 = vld [vmem:[#allocation9 + $0x30] sm:$0xff]
          %v566 = vld [vmem:[#allocation9 + $0x38] sm:$0xff]
          %v567 = vld [vmem:[#allocation9 + $0x40] sm:$0xff]
          %v568 = vld [vmem:[#allocation9 + $0x48] sm:$0xff]
          %v569 = vld [vmem:[#allocation9 + $0x50] sm:$0xff]
          %v570 = vld [vmem:[#allocation9 + $0x58] sm:$0xff]
          %v571 = vld [vmem:[#allocation9 + $0x60] sm:$0xff]
          %v572 = vld [vmem:[#allocation9 + $0x68] sm:$0xff]
          %v573 = vld [vmem:[#allocation9 + $0x70] sm:$0xff]
          %v574 = vld [vmem:[#allocation9 + $0x78] sm:$0xff]
          %v575 = vld [vmem:[%s6] sm:$0x1]
          %v577 = vlaneseq
          %v578 = vshrl.u32 %v577, 7
          %v579 = vsub.s32 0, %v578
          %v580 = vrot.slane %v575, %v579
          %582 = vmatprep.subr.mxu0 0.0
          %583 = vmatpush1.msra.mxu0 %v574
          %584 = vmatprep.subr.mxu0 0.0
          %585 = vmatpush1.msra.mxu0 %v573
          %586 = vmatprep.subr.mxu0 0.0
          %587 = vmatpush1.msra.mxu0 %v572
          %588 = vmatprep.subr.mxu0 0.0
          %589 = vmatpush1.msra.mxu0 %v571
          %590 = vmatprep.subr.mxu0 0.0
          %591 = vmatpush1.msra.mxu0 %v570
          %592 = vmatprep.subr.mxu0 0.0
          %593 = vmatpush1.msra.mxu0 %v569
          %594 = vmatprep.subr.mxu0 0.0
          %595 = vmatpush1.msra.mxu0 %v568
          %596 = vmatprep.subr.mxu0 0.0
          %597 = vmatpush1.msra.mxu0 %v567
          %598 = vmatprep.subr.mxu0 0.0
          %599 = vmatpush1.msra.mxu0 %v566
          %600 = vmatprep.subr.mxu0 0.0
          %601 = vmatpush1.msra.mxu0 %v565
          %602 = vmatprep.subr.mxu0 0.0
          %603 = vmatpush1.msra.mxu0 %v564
          %604 = vmatprep.subr.mxu0 0.0
          %605 = vmatpush1.msra.mxu0 %v563
          %606 = vmatprep.subr.mxu0 0.0
          %607 = vmatpush1.msra.mxu0 %v562
          %608 = vmatprep.subr.mxu0 0.0
          %609 = vmatpush1.msra.mxu0 %v561
          %610 = vmatprep.subr.mxu0 0.0
          %611 = vmatpush1.msra.mxu0 %v560
          %612 = vmatprep.subr.mxu0 0.0
          %613 = vmatpush1.msra.mxu0 %v559
          %614 = vmatprep.subr.mxu0 0.0
          %615 = vmatpush2.msra.mxu0 0.0
          %616 = vmatprep.subr.mxu0 0.0
          %617 = vmatpush2.msra.mxu0 0.0
          %618 = vmatprep.subr.mxu0 0.0
          %619 = vmatpush2.msra.mxu0 0.0
          %620 = vmatprep.subr.mxu0 0.0
          %621 = vmatpush2.msra.mxu0 0.0
          %622 = vmatprep.subr.mxu0 0.0
          %623 = vmatpush2.msra.mxu0 0.0
          %624 = vmatprep.subr.mxu0 0.0
          %625 = vmatpush2.msra.mxu0 0.0
          %626 = vmatprep.subr.mxu0 0.0
          %627 = vmatpush2.msra.mxu0 0.0
          %628 = vmatprep.subr.mxu0 0.0
          %629 = vmatpush2.msra.mxu0 0.0
          %630 = vmatprep.subr.mxu0 0.0
          %631 = vmatpush2.msra.mxu0 0.0
          %632 = vmatprep.subr.mxu0 0.0
          %633 = vmatpush2.msra.mxu0 0.0
          %634 = vmatprep.subr.mxu0 0.0
          %635 = vmatpush2.msra.mxu0 0.0
          %636 = vmatprep.subr.mxu0 0.0
          %637 = vmatpush2.msra.mxu0 0.0
          %638 = vmatprep.subr.mxu0 0.0
          %639 = vmatpush2.msra.mxu0 0.0
          %640 = vmatprep.subr.mxu0 0.0
          %641 = vmatpush2.msra.mxu0 0.0
          %642 = vmatprep.subr.mxu0 0.0
          %643 = vmatpush2.msra.mxu0 0.0
          %644 = vmatprep.subr.mxu0 0.0
          %645 = vmatpush2.msra.mxu0 0.0
          %646 = vmatprep.mubr.f32.mxu0 0.0
          %647 = vmatmul.mubr.f32.gmra.mxu0 %v557
          %v648 = vpop.f32.mrf.mxu0
          %v649 = vadd.f32 %v580, %v648
          %v650 = vpop.f32.mrf.mxu0
          %651 = vmatprep.mubr.f32.mxu0 0.0
          %652 = vmatmul.mubr.f32.gmra.mxu0 %v558
          %v653 = vpop.f32.mrf.mxu0
          %v654 = vadd.f32 %v580, %v653
          %v655 = vpop.f32.mrf.mxu0
          %656 = vdwg.mxu0
          %657 = vst [vmem:[#allocation11] sm:$0xff] %v649
          %658 = vst [vmem:[#allocation11 + $0x8] sm:$0xff] %v654
        $region76: #{tpu_custom_call.1} parent=47 // pred_fallthru
          _
        // Predicated region
        $region77: #{tpu_custom_call.1} parent=47 // pred_check
          %p659 = pneg %p204
        $region78: #{tpu_custom_call.1} parent=47 // pred_check_branch
          %661 = sbr.rel (%p659) target = $region80
        $region79: #{tpu_custom_call.1} parent=47 // pred_region
          %s662 = smul.u32 2, %s26
          %s664 = ssub.s32 256, 256
          %665 = vsyncadd [#allocation5], %s664
          %s666 = smul.addr %s662, 128
          %s667 = scalar_lea.hbm %s7, %s666
          %s668 = sshll.u32 [#allocation11], 4
          %s669 = int_to_ptr.vmem [resolvable:$true] %s668
          %674 = dma.vmem_to_hbm [thread:$0]  %s669, 256, %s667, [#allocation5], 128, 128, 8
        $region80: #{tpu_custom_call.1} parent=47 // pred_fallthru
          _
        // Predicated region
        $region81: #{tpu_custom_call.1} parent=47 // pred_check
          %p675 = pneg %p204
        $region82: #{tpu_custom_call.1} parent=47 // pred_check_branch
          %677 = sbr.rel (%p675) target = $region84
        $region83: #{tpu_custom_call.1} parent=47 // pred_region
          %678 = dma.done [#allocation5], 256
        $region84: #{tpu_custom_call.1} parent=47 // pred_fallthru
          _
      $region48: #{tpu_custom_call.1} parent=5 // pred_fallthru
        _
      %p679 = scmp.le.s32.totalorder 2, %s17
      // Predicated region
      $region85: #{tpu_custom_call.1} parent=5 // pred_check
        %p680 = pneg %p679
      $region86: #{tpu_custom_call.1} parent=5 // pred_check_branch
        %682 = sbr.rel (%p680) target = $region88
      $region87: #{tpu_custom_call.1} parent=5 // pred_region
        %s683 = ssub.s32 %s17, 2
      $region88: #{tpu_custom_call.1} parent=5 // pred_fallthru
        _
    $region6: #{tpu_custom_call.1} parent=1 // loop_footer
      %s21 = sadd.s32 1, %s17
    $region7: #{tpu_custom_call.1} parent=1 // loop_footer_branch
      %16 = sbr.rel target = $region3
    $region8: #{tpu_custom_call.1} parent=1 // loop_exit
      _
    %684 = vsyncpa [#allocation4], 1
    %s685 = scalar_lea.sflag [#allocation4], 1
    %686 = vsyncpa %s685, 1
    %687 = vsyncpa [#allocation7], 1
    %688 = vsyncpa [#allocation10], 1
    %689 = vsyncpa [#allocation5], 1
    %s690 = scalar_lea.sflag [#allocation5], 1
    %691 = vsyncpa %s690, 1

</llo_original>
